<compile_context>
chip_gen: v7x
topology: tpu7x:2x2x1
jax: 0.10.0
libtpu: 0.0.40
codegen_flags: <defaults>
</compile_context>

<pallas_src>
import jax
import jax.numpy as jnp
import numpy as np
from jax.experimental import pallas as pl
from jax.experimental.pallas import tpu as pltpu

W_BIT = 4
PACK = 32 // W_BIT  # 8
ORDER_MAP = [0, 2, 4, 6, 1, 3, 5, 7]  # AWQ within-pack column order


# ----------------------------- Pallas kernel -----------------------------
def _wq_kernel(x_ref, qw_ref, s_ref, sz_ref, b_ref, o_ref, w_ref):
    """One (tm x tn) output tile of x @ dequant(W) + bias.

    x_ref : (tm, K)    bf16 activations
    qw_ref: (K, tn8)   i32 packed 4-bit weights, tile-shift-major repacked
    s_ref : (G, tn)    f32 scales (logical column order)
    sz_ref: (G, tn)    f32 zero_point * scale (logical column order)
    b_ref : (1, tn)    f32 bias (logical column order)
    o_ref : (tm, tn)   output
    w_ref : (K, tn)    bf16 VMEM scratch: dequantized weight slab for this N tile
    """
    K, tn8 = qw_ref.shape
    G = s_ref.shape[0]
    gs = K // G  # quantization group size along K

    # Dequantize this N slab once (inner M index == 0); the scratch persists and is
    # reused for every M tile of this N slab.  Correct under ("parallel","arbitrary"):
    # the M axis is sequential per core, and each core re-dequantizes for its own n.
    @pl.when(pl.program_id(1) == 0)
    def _dequant():
        qw = qw_ref[...]                                              # (K, tn8) i32
        for i in range(PACK):                                         # 8 nibble shifts, unrolled
            iw = jnp.bitwise_and(jnp.right_shift(qw, 4 * i), 0xF)     # (K, tn8)
            iw = iw.reshape(G, gs, tn8).astype(jnp.float32)           # (G, gs, tn8)
            s_i = s_ref[:, i * tn8:(i + 1) * tn8][:, None, :]         # (G, 1, tn8)
            sz_i = sz_ref[:, i * tn8:(i + 1) * tn8][:, None, :]       # (G, 1, tn8)
            w = iw * s_i - sz_i                                       # == (iw - iz) * s
            w_ref[:, i * tn8:(i + 1) * tn8] = w.reshape(K, tn8).astype(w_ref.dtype)

    acc = jnp.dot(x_ref[...], w_ref[...], preferred_element_type=jnp.float32)
    o_ref[...] = (acc + b_ref[...]).astype(o_ref.dtype)


# ----------------------------- host-side glue -----------------------------
def _round_up(v, m):
    return (v + m - 1) // m * m


def _pick_tile_n(N, desired):
    """Largest N-tile <= desired with N % tn == 0 and a lane-dense packed block
    (tn//8 must be a multiple of 128, i.e. tn % 1024 == 0); else fall back to full N."""
    t = min(desired, N) // 1024 * 1024
    while t >= 1024:
        if N % t == 0:
            return t
        t -= 1024
    return N


def _unpack_awq(packed):
    """(R, C//8) AWQ-packed int32 -> (R, C) int values 0..15 in logical column order."""
    R, C8 = packed.shape
    C = C8 * PACK
    inv_order = np.argsort(np.array(ORDER_MAP))          # [0,4,1,5,2,6,3,7]
    cols = np.arange(C) // PACK
    shifts = jnp.asarray(4 * inv_order[np.arange(C) % PACK], dtype=jnp.int32)
    return jnp.bitwise_and(jnp.right_shift(packed[:, cols], shifts[None, :]), 0xF)


def _repack_tile_shift_major(qweight, tn):
    """One-time static repack (cacheable per weight): AWQ order -> tile-shift-major,
    so the kernel's nibble-i unpack of words [n*tn8, (n+1)*tn8) yields the contiguous
    logical columns [n*tn + i*tn8, n*tn + (i+1)*tn8)."""
    K, N8 = qweight.shape
    tn8 = tn // PACK
    iw = _unpack_awq(qweight)                             # (K, N) logical order
    jj = np.arange(N8)
    t, j = jj // tn8, jj % tn8
    packed = jnp.zeros((K, N8), dtype=jnp.int32)
    for i in range(PACK):
        cols = t * tn + i * tn8 + j                       # logical column for nibble i of word jj
        packed = packed | jnp.left_shift(iw[:, cols], 4 * i)
    return packed


def wqlinear_forward(x, qweight, qzeros, scales, bias, *, group_size,
                     tm=256, tn=1024, out_dtype=None):
    """Pallas implementation of WQLinear.forward (4-bit AWQ)."""
    K, N8 = qweight.shape
    N = N8 * PACK
    group_size = K if group_size in (-1, None) else group_size
    assert K % group_size == 0
    G = K // group_size
    assert qzeros.shape == (G, N8) and scales.shape == (G, N)

    out_dtype = x.dtype if out_dtype is None else out_dtype
    orig_shape = x.shape
    x2 = x.reshape(-1, K)
    M = x2.shape[0]

    # ---- tiling ----
    tn = _pick_tile_n(N, tn)
    tn8 = tn // PACK
    tm = max(8, min(_round_up(tm, 8), _round_up(M, 8)))
    M_pad = _round_up(M, tm)
    if M_pad != M:
        x2 = jnp.pad(x2, ((0, M_pad - M), (0, 0)))
    x2 = x2.astype(jnp.bfloat16)

    # ---- one-time per-weight prep (static; cache these in real serving) ----
    qw_rep = _repack_tile_shift_major(qweight, tn)                        # (K, N8) i32
    scales_f = scales.astype(jnp.float32)                                 # (G, N)
    scale_zeros = _unpack_awq(qzeros).astype(jnp.float32) * scales_f      # (G, N)
    if bias is None:
        bias = jnp.zeros((N,), jnp.float32)
    bias2 = bias.astype(jnp.float32).reshape(1, N)

    grid = (N // tn, M_pad // tm)   # N outermost (parallel), M innermost (arbitrary)

    out = pl.pallas_call(
        _wq_kernel,
        out_shape=jax.ShapeDtypeStruct((M_pad, N), out_dtype),
        grid_spec=pltpu.PrefetchScalarGridSpec(
            num_scalar_prefetch=0,
            grid=grid,
            in_specs=[
                pl.BlockSpec((tm, K), lambda n, m: (m, 0)),     # x tile (bf16)
                pl.BlockSpec((K, tn8), lambda n, m: (0, n)),    # repacked 4-bit weights
                pl.BlockSpec((G, tn), lambda n, m: (0, n)),     # scales
                pl.BlockSpec((G, tn), lambda n, m: (0, n)),     # zero * scale
                pl.BlockSpec((1, tn), lambda n, m: (0, n)),     # bias
            ],
            out_specs=pl.BlockSpec((tm, tn), lambda n, m: (m, n)),
            scratch_shapes=[pltpu.VMEM((K, tn), jnp.bfloat16)],
        ),
        compiler_params=pltpu.CompilerParams(
            dimension_semantics=("parallel", "arbitrary"),
            vmem_limit_bytes=48 * 1024 * 1024,
        ),
    )(x2, qw_rep, scales_f, scale_zeros, bias2)

    return out[:M].reshape(orig_shape[:-1] + (N,))


# -------------- pure-JAX reference (dequantize_gemm + matmul, f32) --------------
def ref_forward(x, qweight, qzeros, scales, bias, group_size):
    K, N8 = qweight.shape
    N = N8 * PACK
    iw = _unpack_awq(qweight)
    iz = _unpack_awq(qzeros)
    w = (iw - jnp.repeat(iz, group_size, axis=0)).astype(jnp.float32) * jnp.repeat(
        scales.astype(jnp.float32), group_size, axis=0
    )
    out = x.reshape(-1, K).astype(jnp.float32) @ w + bias[None, :]
    return out.reshape(x.shape[:-1] + (N,))


def pack_awq(ints):
    """Pack int values in [0, 16) along the last axis into int32, AWQ column order
    (mirrors WQLinear.from_linear packing)."""
    rows, n = ints.shape
    n8 = n // PACK
    packed = jnp.zeros((rows, n8), dtype=jnp.int32)
    for i in range(PACK):
        col_idx = jnp.arange(n8) * PACK + ORDER_MAP[i]
        packed = packed | jnp.left_shift(ints[:, col_idx], 4 * i)
    return packed


if __name__ == "__main__":
    B, S = 2, 8                       # leading dims of x (flattened to M = 16)
    K, N, group_size = 128, 128, 32   # in_features, out_features, AWQ group size
    G, N8 = K // group_size, N // PACK

    key = jax.random.PRNGKey(0)
    k1, k2, k3, k4, k5 = jax.random.split(key, 5)
    intweight = jax.random.randint(k1, (K, N), 0, 16, dtype=jnp.int32)
    zeros = jax.random.randint(k2, (G, N), 0, 16, dtype=jnp.int32)
    scales = jax.random.uniform(k3, (G, N), jnp.float32, 0.005, 0.02)
    bias = 0.1 * jax.random.normal(k4, (N,), jnp.float32)
    x = jax.random.normal(k5, (B, S, K), jnp.float32)

    qweight = pack_awq(intweight)   # (K, N//8) int32
    qzeros = pack_awq(zeros)        # (G, N//8) int32

    ref = ref_forward(x, qweight, qzeros, scales, bias, group_size)

    # Default tiling (single M tile at this small M).
    out = wqlinear_forward(x, qweight, qzeros, scales, bias, group_size=group_size)
    out = jax.block_until_ready(out)
    assert out.shape == (B, S, N)
    # bf16 MXU path -> looser tolerance vs f32 reference.
    np.testing.assert_allclose(np.asarray(out), np.asarray(ref), rtol=3e-2, atol=3e-2)

    # Small tm to exercise multiple M tiles reusing the dequantized VMEM slab.
    out2 = jax.block_until_ready(
        wqlinear_forward(x, qweight, qzeros, scales, bias, group_size=group_size, tm=8)
    )
    np.testing.assert_allclose(np.asarray(out2), np.asarray(ref), rtol=3e-2, atol=3e-2)

    print("KERNEL_OK")
</pallas_src>

<mosaic_0001>
module attributes {stable_mosaic.version = 11 : i64} {
  func.func @_wq_kernel(%arg0: i32, %arg1: i32, %arg2: memref<16x128xbf16, #tpu.memory_space<vmem>>, %arg3: memref<128x16xi32, #tpu.memory_space<vmem>>, %arg4: memref<4x128xf32, #tpu.memory_space<vmem>>, %arg5: memref<4x128xf32, #tpu.memory_space<vmem>>, %arg6: memref<1x128xf32, #tpu.memory_space<vmem>>, %arg7: memref<16x128xf32, #tpu.memory_space<vmem>>, %arg8: memref<128x128xbf16, #tpu.memory_space<vmem>>) attributes {dimension_semantics = [#tpu.dimension_semantics<parallel>, #tpu.dimension_semantics<arbitrary>], iteration_bounds = array<i64: 1, 1>, scalar_prefetch = 0 : i64, scratch_operands = 1 : i64, tpu.core_type = #tpu.core_type<tc>, window_params = [{transform_indices = @transform_0, window_bounds = array<i64: 16, 128>}, {transform_indices = @transform_1, window_bounds = array<i64: 128, 16>}, {transform_indices = @transform_2, window_bounds = array<i64: 4, 128>}, {transform_indices = @transform_3, window_bounds = array<i64: 4, 128>}, {transform_indices = @transform_4, window_bounds = array<i64: 1, 128>}, {transform_indices = @transform_5, window_bounds = array<i64: 16, 128>}]} {
    %c0_i32 = arith.constant 0 : i32
    %0 = arith.cmpi eq, %arg1, %c0_i32 : i32
    %1 = arith.extui %0 : i1 to i32
    %c0_i32_0 = arith.constant 0 : i32
    %2 = arith.cmpi ne, %1, %c0_i32_0 : i32
    scf.if %2 {
      %c0_8 = arith.constant 0 : index
      %c0_9 = arith.constant 0 : index
      %10 = vector.load %arg3[%c0_8, %c0_9] : memref<128x16xi32, #tpu.memory_space<vmem>>, vector<128x16xi32>
      %c0_i32_10 = arith.constant 0 : i32
      %11 = vector.broadcast %c0_i32_10 : i32 to vector<128x16xi32>
      %12 = arith.shrsi %10, %11 : vector<128x16xi32>
      %c15_i32 = arith.constant 15 : i32
      %13 = vector.broadcast %c15_i32 : i32 to vector<128x16xi32>
      %14 = arith.andi %12, %13 : vector<128x16xi32>
      %15 = vector.shape_cast %14 : vector<128x16xi32> to vector<4x32x16xi32>
      %16 = arith.sitofp %15 : vector<4x32x16xi32> to vector<4x32x16xf32>
      %c0_11 = arith.constant 0 : index
      %c0_12 = arith.constant 0 : index
      %17 = vector.load %arg4[%c0_11, %c0_12] : memref<4x128xf32, #tpu.memory_space<vmem>>, vector<4x16xf32>
      %18 = vector.shape_cast %17 : vector<4x16xf32> to vector<4x1x16xf32>
      %c0_13 = arith.constant 0 : index
      %c0_14 = arith.constant 0 : index
      %19 = vector.load %arg5[%c0_13, %c0_14] : memref<4x128xf32, #tpu.memory_space<vmem>>, vector<4x16xf32>
      %20 = vector.shape_cast %19 : vector<4x16xf32> to vector<4x1x16xf32>
      %21 = vector.broadcast %18 : vector<4x1x16xf32> to vector<4x32x16xf32>
      %22 = arith.mulf %16, %21 : vector<4x32x16xf32>
      %23 = vector.broadcast %20 : vector<4x1x16xf32> to vector<4x32x16xf32>
      %24 = arith.subf %22, %23 : vector<4x32x16xf32>
      %25 = vector.shape_cast %24 : vector<4x32x16xf32> to vector<128x16xf32>
      %26 = arith.truncf %25 : vector<128x16xf32> to vector<128x16xbf16>
      %c0_15 = arith.constant 0 : index
      %c0_16 = arith.constant 0 : index
      %27 = vector.load %arg8[%c0_15, %c0_16] : memref<128x128xbf16, #tpu.memory_space<vmem>>, vector<128x16xbf16>
      tpu.vector_store %arg8[%c0_15, %c0_16], %26 {strides = array<i32>} : memref<128x128xbf16, #tpu.memory_space<vmem>>, vector<128x16xbf16>,
      %c4_i32 = arith.constant 4 : i32
      %28 = vector.broadcast %c4_i32 : i32 to vector<128x16xi32>
      %29 = arith.shrsi %10, %28 : vector<128x16xi32>
      %c15_i32_17 = arith.constant 15 : i32
      %30 = vector.broadcast %c15_i32_17 : i32 to vector<128x16xi32>
      %31 = arith.andi %29, %30 : vector<128x16xi32>
      %32 = vector.shape_cast %31 : vector<128x16xi32> to vector<4x32x16xi32>
      %33 = arith.sitofp %32 : vector<4x32x16xi32> to vector<4x32x16xf32>
      %c0_18 = arith.constant 0 : index
      %c16 = arith.constant 16 : index
      %34 = vector.load %arg4[%c0_18, %c16] : memref<4x128xf32, #tpu.memory_space<vmem>>, vector<4x16xf32>
      %35 = vector.shape_cast %34 : vector<4x16xf32> to vector<4x1x16xf32>
      %c0_19 = arith.constant 0 : index
      %c16_20 = arith.constant 16 : index
      %36 = vector.load %arg5[%c0_19, %c16_20] : memref<4x128xf32, #tpu.memory_space<vmem>>, vector<4x16xf32>
      %37 = vector.shape_cast %36 : vector<4x16xf32> to vector<4x1x16xf32>
      %38 = vector.broadcast %35 : vector<4x1x16xf32> to vector<4x32x16xf32>
      %39 = arith.mulf %33, %38 : vector<4x32x16xf32>
      %40 = vector.broadcast %37 : vector<4x1x16xf32> to vector<4x32x16xf32>
      %41 = arith.subf %39, %40 : vector<4x32x16xf32>
      %42 = vector.shape_cast %41 : vector<4x32x16xf32> to vector<128x16xf32>
      %43 = arith.truncf %42 : vector<128x16xf32> to vector<128x16xbf16>
      %c0_21 = arith.constant 0 : index
      %c16_22 = arith.constant 16 : index
      %44 = vector.load %arg8[%c0_21, %c16_22] : memref<128x128xbf16, #tpu.memory_space<vmem>>, vector<128x16xbf16>
      tpu.vector_store %arg8[%c0_21, %c16_22], %43 {strides = array<i32>} : memref<128x128xbf16, #tpu.memory_space<vmem>>, vector<128x16xbf16>,
      %c8_i32 = arith.constant 8 : i32
      %45 = vector.broadcast %c8_i32 : i32 to vector<128x16xi32>
      %46 = arith.shrsi %10, %45 : vector<128x16xi32>
      %c15_i32_23 = arith.constant 15 : i32
      %47 = vector.broadcast %c15_i32_23 : i32 to vector<128x16xi32>
      %48 = arith.andi %46, %47 : vector<128x16xi32>
      %49 = vector.shape_cast %48 : vector<128x16xi32> to vector<4x32x16xi32>
      %50 = arith.sitofp %49 : vector<4x32x16xi32> to vector<4x32x16xf32>
      %c0_24 = arith.constant 0 : index
      %c32 = arith.constant 32 : index
      %51 = vector.load %arg4[%c0_24, %c32] : memref<4x128xf32, #tpu.memory_space<vmem>>, vector<4x16xf32>
      %52 = vector.shape_cast %51 : vector<4x16xf32> to vector<4x1x16xf32>
      %c0_25 = arith.constant 0 : index
      %c32_26 = arith.constant 32 : index
      %53 = vector.load %arg5[%c0_25, %c32_26] : memref<4x128xf32, #tpu.memory_space<vmem>>, vector<4x16xf32>
      %54 = vector.shape_cast %53 : vector<4x16xf32> to vector<4x1x16xf32>
      %55 = vector.broadcast %52 : vector<4x1x16xf32> to vector<4x32x16xf32>
      %56 = arith.mulf %50, %55 : vector<4x32x16xf32>
      %57 = vector.broadcast %54 : vector<4x1x16xf32> to vector<4x32x16xf32>
      %58 = arith.subf %56, %57 : vector<4x32x16xf32>
      %59 = vector.shape_cast %58 : vector<4x32x16xf32> to vector<128x16xf32>
      %60 = arith.truncf %59 : vector<128x16xf32> to vector<128x16xbf16>
      %c0_27 = arith.constant 0 : index
      %c32_28 = arith.constant 32 : index
      %61 = vector.load %arg8[%c0_27, %c32_28] : memref<128x128xbf16, #tpu.memory_space<vmem>>, vector<128x16xbf16>
      tpu.vector_store %arg8[%c0_27, %c32_28], %60 {strides = array<i32>} : memref<128x128xbf16, #tpu.memory_space<vmem>>, vector<128x16xbf16>,
      %c12_i32 = arith.constant 12 : i32
      %62 = vector.broadcast %c12_i32 : i32 to vector<128x16xi32>
      %63 = arith.shrsi %10, %62 : vector<128x16xi32>
      %c15_i32_29 = arith.constant 15 : i32
      %64 = vector.broadcast %c15_i32_29 : i32 to vector<128x16xi32>
      %65 = arith.andi %63, %64 : vector<128x16xi32>
      %66 = vector.shape_cast %65 : vector<128x16xi32> to vector<4x32x16xi32>
      %67 = arith.sitofp %66 : vector<4x32x16xi32> to vector<4x32x16xf32>
      %c0_30 = arith.constant 0 : index
      %c48 = arith.constant 48 : index
      %68 = vector.load %arg4[%c0_30, %c48] : memref<4x128xf32, #tpu.memory_space<vmem>>, vector<4x16xf32>
      %69 = vector.shape_cast %68 : vector<4x16xf32> to vector<4x1x16xf32>
      %c0_31 = arith.constant 0 : index
      %c48_32 = arith.constant 48 : index
      %70 = vector.load %arg5[%c0_31, %c48_32] : memref<4x128xf32, #tpu.memory_space<vmem>>, vector<4x16xf32>
      %71 = vector.shape_cast %70 : vector<4x16xf32> to vector<4x1x16xf32>
      %72 = vector.broadcast %69 : vector<4x1x16xf32> to vector<4x32x16xf32>
      %73 = arith.mulf %67, %72 : vector<4x32x16xf32>
      %74 = vector.broadcast %71 : vector<4x1x16xf32> to vector<4x32x16xf32>
      %75 = arith.subf %73, %74 : vector<4x32x16xf32>
      %76 = vector.shape_cast %75 : vector<4x32x16xf32> to vector<128x16xf32>
      %77 = arith.truncf %76 : vector<128x16xf32> to vector<128x16xbf16>
      %c0_33 = arith.constant 0 : index
      %c48_34 = arith.constant 48 : index
      %78 = vector.load %arg8[%c0_33, %c48_34] : memref<128x128xbf16, #tpu.memory_space<vmem>>, vector<128x16xbf16>
      tpu.vector_store %arg8[%c0_33, %c48_34], %77 {strides = array<i32>} : memref<128x128xbf16, #tpu.memory_space<vmem>>, vector<128x16xbf16>,
      %c16_i32 = arith.constant 16 : i32
      %79 = vector.broadcast %c16_i32 : i32 to vector<128x16xi32>
      %80 = arith.shrsi %10, %79 : vector<128x16xi32>
      %c15_i32_35 = arith.constant 15 : i32
      %81 = vector.broadcast %c15_i32_35 : i32 to vector<128x16xi32>
      %82 = arith.andi %80, %81 : vector<128x16xi32>
      %83 = vector.shape_cast %82 : vector<128x16xi32> to vector<4x32x16xi32>
      %84 = arith.sitofp %83 : vector<4x32x16xi32> to vector<4x32x16xf32>
      %c0_36 = arith.constant 0 : index
      %c64 = arith.constant 64 : index
      %85 = vector.load %arg4[%c0_36, %c64] : memref<4x128xf32, #tpu.memory_space<vmem>>, vector<4x16xf32>
      %86 = vector.shape_cast %85 : vector<4x16xf32> to vector<4x1x16xf32>
      %c0_37 = arith.constant 0 : index
      %c64_38 = arith.constant 64 : index
      %87 = vector.load %arg5[%c0_37, %c64_38] : memref<4x128xf32, #tpu.memory_space<vmem>>, vector<4x16xf32>
      %88 = vector.shape_cast %87 : vector<4x16xf32> to vector<4x1x16xf32>
      %89 = vector.broadcast %86 : vector<4x1x16xf32> to vector<4x32x16xf32>
      %90 = arith.mulf %84, %89 : vector<4x32x16xf32>
      %91 = vector.broadcast %88 : vector<4x1x16xf32> to vector<4x32x16xf32>
      %92 = arith.subf %90, %91 : vector<4x32x16xf32>
      %93 = vector.shape_cast %92 : vector<4x32x16xf32> to vector<128x16xf32>
      %94 = arith.truncf %93 : vector<128x16xf32> to vector<128x16xbf16>
      %c0_39 = arith.constant 0 : index
      %c64_40 = arith.constant 64 : index
      %95 = vector.load %arg8[%c0_39, %c64_40] : memref<128x128xbf16, #tpu.memory_space<vmem>>, vector<128x16xbf16>
      tpu.vector_store %arg8[%c0_39, %c64_40], %94 {strides = array<i32>} : memref<128x128xbf16, #tpu.memory_space<vmem>>, vector<128x16xbf16>,
      %c20_i32 = arith.constant 20 : i32
      %96 = vector.broadcast %c20_i32 : i32 to vector<128x16xi32>
      %97 = arith.shrsi %10, %96 : vector<128x16xi32>
      %c15_i32_41 = arith.constant 15 : i32
      %98 = vector.broadcast %c15_i32_41 : i32 to vector<128x16xi32>
      %99 = arith.andi %97, %98 : vector<128x16xi32>
      %100 = vector.shape_cast %99 : vector<128x16xi32> to vector<4x32x16xi32>
      %101 = arith.sitofp %100 : vector<4x32x16xi32> to vector<4x32x16xf32>
      %c0_42 = arith.constant 0 : index
      %c80 = arith.constant 80 : index
      %102 = vector.load %arg4[%c0_42, %c80] : memref<4x128xf32, #tpu.memory_space<vmem>>, vector<4x16xf32>
      %103 = vector.shape_cast %102 : vector<4x16xf32> to vector<4x1x16xf32>
      %c0_43 = arith.constant 0 : index
      %c80_44 = arith.constant 80 : index
      %104 = vector.load %arg5[%c0_43, %c80_44] : memref<4x128xf32, #tpu.memory_space<vmem>>, vector<4x16xf32>
      %105 = vector.shape_cast %104 : vector<4x16xf32> to vector<4x1x16xf32>
      %106 = vector.broadcast %103 : vector<4x1x16xf32> to vector<4x32x16xf32>
      %107 = arith.mulf %101, %106 : vector<4x32x16xf32>
      %108 = vector.broadcast %105 : vector<4x1x16xf32> to vector<4x32x16xf32>
      %109 = arith.subf %107, %108 : vector<4x32x16xf32>
      %110 = vector.shape_cast %109 : vector<4x32x16xf32> to vector<128x16xf32>
      %111 = arith.truncf %110 : vector<128x16xf32> to vector<128x16xbf16>
      %c0_45 = arith.constant 0 : index
      %c80_46 = arith.constant 80 : index
      %112 = vector.load %arg8[%c0_45, %c80_46] : memref<128x128xbf16, #tpu.memory_space<vmem>>, vector<128x16xbf16>
      tpu.vector_store %arg8[%c0_45, %c80_46], %111 {strides = array<i32>} : memref<128x128xbf16, #tpu.memory_space<vmem>>, vector<128x16xbf16>,
      %c24_i32 = arith.constant 24 : i32
      %113 = vector.broadcast %c24_i32 : i32 to vector<128x16xi32>
      %114 = arith.shrsi %10, %113 : vector<128x16xi32>
      %c15_i32_47 = arith.constant 15 : i32
      %115 = vector.broadcast %c15_i32_47 : i32 to vector<128x16xi32>
      %116 = arith.andi %114, %115 : vector<128x16xi32>
      %117 = vector.shape_cast %116 : vector<128x16xi32> to vector<4x32x16xi32>
      %118 = arith.sitofp %117 : vector<4x32x16xi32> to vector<4x32x16xf32>
      %c0_48 = arith.constant 0 : index
      %c96 = arith.constant 96 : index
      %119 = vector.load %arg4[%c0_48, %c96] : memref<4x128xf32, #tpu.memory_space<vmem>>, vector<4x16xf32>
      %120 = vector.shape_cast %119 : vector<4x16xf32> to vector<4x1x16xf32>
      %c0_49 = arith.constant 0 : index
      %c96_50 = arith.constant 96 : index
      %121 = vector.load %arg5[%c0_49, %c96_50] : memref<4x128xf32, #tpu.memory_space<vmem>>, vector<4x16xf32>
      %122 = vector.shape_cast %121 : vector<4x16xf32> to vector<4x1x16xf32>
      %123 = vector.broadcast %120 : vector<4x1x16xf32> to vector<4x32x16xf32>
      %124 = arith.mulf %118, %123 : vector<4x32x16xf32>
      %125 = vector.broadcast %122 : vector<4x1x16xf32> to vector<4x32x16xf32>
      %126 = arith.subf %124, %125 : vector<4x32x16xf32>
      %127 = vector.shape_cast %126 : vector<4x32x16xf32> to vector<128x16xf32>
      %128 = arith.truncf %127 : vector<128x16xf32> to vector<128x16xbf16>
      %c0_51 = arith.constant 0 : index
      %c96_52 = arith.constant 96 : index
      %129 = vector.load %arg8[%c0_51, %c96_52] : memref<128x128xbf16, #tpu.memory_space<vmem>>, vector<128x16xbf16>
      tpu.vector_store %arg8[%c0_51, %c96_52], %128 {strides = array<i32>} : memref<128x128xbf16, #tpu.memory_space<vmem>>, vector<128x16xbf16>,
      %c28_i32 = arith.constant 28 : i32
      %130 = vector.broadcast %c28_i32 : i32 to vector<128x16xi32>
      %131 = arith.shrsi %10, %130 : vector<128x16xi32>
      %c15_i32_53 = arith.constant 15 : i32
      %132 = vector.broadcast %c15_i32_53 : i32 to vector<128x16xi32>
      %133 = arith.andi %131, %132 : vector<128x16xi32>
      %134 = vector.shape_cast %133 : vector<128x16xi32> to vector<4x32x16xi32>
      %135 = arith.sitofp %134 : vector<4x32x16xi32> to vector<4x32x16xf32>
      %c0_54 = arith.constant 0 : index
      %c112 = arith.constant 112 : index
      %136 = vector.load %arg4[%c0_54, %c112] : memref<4x128xf32, #tpu.memory_space<vmem>>, vector<4x16xf32>
      %137 = vector.shape_cast %136 : vector<4x16xf32> to vector<4x1x16xf32>
      %c0_55 = arith.constant 0 : index
      %c112_56 = arith.constant 112 : index
      %138 = vector.load %arg5[%c0_55, %c112_56] : memref<4x128xf32, #tpu.memory_space<vmem>>, vector<4x16xf32>
      %139 = vector.shape_cast %138 : vector<4x16xf32> to vector<4x1x16xf32>
      %140 = vector.broadcast %137 : vector<4x1x16xf32> to vector<4x32x16xf32>
      %141 = arith.mulf %135, %140 : vector<4x32x16xf32>
      %142 = vector.broadcast %139 : vector<4x1x16xf32> to vector<4x32x16xf32>
      %143 = arith.subf %141, %142 : vector<4x32x16xf32>
      %144 = vector.shape_cast %143 : vector<4x32x16xf32> to vector<128x16xf32>
      %145 = arith.truncf %144 : vector<128x16xf32> to vector<128x16xbf16>
      %c0_57 = arith.constant 0 : index
      %c112_58 = arith.constant 112 : index
      %146 = vector.load %arg8[%c0_57, %c112_58] : memref<128x128xbf16, #tpu.memory_space<vmem>>, vector<128x16xbf16>
      tpu.vector_store %arg8[%c0_57, %c112_58], %145 {strides = array<i32>} : memref<128x128xbf16, #tpu.memory_space<vmem>>, vector<128x16xbf16>,
    } else {
    }
    %c0 = arith.constant 0 : index
    %c0_1 = arith.constant 0 : index
    %3 = vector.load %arg2[%c0, %c0_1] : memref<16x128xbf16, #tpu.memory_space<vmem>>, vector<16x128xbf16>
    %c0_2 = arith.constant 0 : index
    %c0_3 = arith.constant 0 : index
    %4 = vector.load %arg8[%c0_2, %c0_3] : memref<128x128xbf16, #tpu.memory_space<vmem>>, vector<128x128xbf16>
    %cst = arith.constant dense<0.000000e+00> : vector<16x128xf32>
    %5 = tpu.matmul %3, %4, %cst {dimension_numbers = #tpu.dot_dimension_numbers<[1], [0], [0], [1], [0, 0, 1, 1], [], []>} : vector<16x128xbf16>, vector<128x128xbf16>, vector<16x128xf32> -> vector<16x128xf32>
    %c0_4 = arith.constant 0 : index
    %c0_5 = arith.constant 0 : index
    %6 = vector.load %arg6[%c0_4, %c0_5] : memref<1x128xf32, #tpu.memory_space<vmem>>, vector<1x128xf32>
    %7 = vector.broadcast %6 : vector<1x128xf32> to vector<16x128xf32>
    %8 = arith.addf %5, %7 : vector<16x128xf32>
    %c0_6 = arith.constant 0 : index
    %c0_7 = arith.constant 0 : index
    %9 = vector.load %arg7[%c0_6, %c0_7] : memref<16x128xf32, #tpu.memory_space<vmem>>, vector<16x128xf32>
    tpu.vector_store %arg7[%c0_6, %c0_7], %8 {strides = array<i32>} : memref<16x128xf32, #tpu.memory_space<vmem>>, vector<16x128xf32>,
    return
  }
  func.func @transform_0(%arg0: i32, %arg1: i32) -> (i32, i32) {
    %c0_i32 = arith.constant 0 : i32
    %c0_i32_0 = arith.constant 0 : i32
    return %arg1, %c0_i32 : i32, i32
  }
  func.func @transform_1(%arg0: i32, %arg1: i32) -> (i32, i32) {
    %c0_i32 = arith.constant 0 : i32
    %c0_i32_0 = arith.constant 0 : i32
    return %c0_i32, %arg0 : i32, i32
  }
  func.func @transform_2(%arg0: i32, %arg1: i32) -> (i32, i32) {
    %c0_i32 = arith.constant 0 : i32
    %c0_i32_0 = arith.constant 0 : i32
    return %c0_i32, %arg0 : i32, i32
  }
  func.func @transform_3(%arg0: i32, %arg1: i32) -> (i32, i32) {
    %c0_i32 = arith.constant 0 : i32
    %c0_i32_0 = arith.constant 0 : i32
    return %c0_i32, %arg0 : i32, i32
  }
  func.func @transform_4(%arg0: i32, %arg1: i32) -> (i32, i32) {
    %c0_i32 = arith.constant 0 : i32
    %c0_i32_0 = arith.constant 0 : i32
    return %c0_i32, %arg0 : i32, i32
  }
  func.func @transform_5(%arg0: i32, %arg1: i32) -> (i32, i32) {
    %c0_i32 = arith.constant 0 : i32
    return %arg1, %arg0 : i32, i32
  }
}

</mosaic_0001>

<llo_original>
// kernel: tpu_custom_call.1
$region0: #{tpu_custom_call.1}
  #allocation0 [shape = 'u32[]', space=smem, size = 0x4, offset = 0x4, fixed_abs, tag = 'smem constant byte address 0x4 - core index']
  #allocation1 [shape = 'u32[144,128]{1,0:T(1,128)}', space=vmem, size = 0x12000, scoped, tag = 'internal scratch']
  #allocation2 [shape = 'bf16[128,128]{1,0:T(16,128)(2,1)}', space=vmem, size = 0x8000, scoped, tag = 'scratch operand']
  %s0 = inlined_call_operand.vmem [shape: bf16[16,128], index: 0, kind: input, shape index: {}]
  %s1 = inlined_call_operand.vmem [shape: s32[128,16], index: 1, kind: input, shape index: {}]
  %s2 = inlined_call_operand.vmem [shape: f32[4,128], index: 2, kind: input, shape index: {}]
  %s3 = inlined_call_operand.vmem [shape: f32[4,128], index: 3, kind: input, shape index: {}]
  %s4 = inlined_call_operand.vmem [shape: f32[1,128], index: 4, kind: input, shape index: {}]
  %s5 = inlined_call_operand.hbm [shape: f32[16,128], index: 5, kind: output, shape index: {}]
  %s6 = sld [smem:[#allocation0]]
  $region34: #{tpu_custom_call.1} parent=0
    _
  %s8 = ssub.s32 1, %s6
  %s9 = scalar_select 0, %s8, %s6
  $region1: #{tpu_custom_call.1} parent=0
    #allocation3 [shape = 'u8[8192]{0}', space=vmem, size = 0x2000, scoped, tag = 'output window, operand 0, single buffered']
    #allocation4 [shape = 's32[1]{0}', space=sflag, size = 0x4, scoped, tag = 'scoped memory for tpu_custom_call.1']
    %10 = vsyncpa [#allocation4], 0
    // Predicated region
    $region2: #{tpu_custom_call.1} parent=1 // pred_check
      _
    $region3: #{tpu_custom_call.1} parent=1 // pred_check_branch
      %12 = sbr.rel (0) target = $region5
    $region4: #{tpu_custom_call.1} parent=1 // pred_region
      _
    $region5: #{tpu_custom_call.1} parent=1 // pred_fallthru
      _
    // Predicated region
    $region6: #{tpu_custom_call.1} parent=1 // pred_check
      _
    $region7: #{tpu_custom_call.1} parent=1 // pred_check_branch
      %14 = sbr.rel (0) target = $region9
    $region8: #{tpu_custom_call.1} parent=1 // pred_region
      _
    $region9: #{tpu_custom_call.1} parent=1 // pred_fallthru
      _
    // Predicated region
    $region10: #{tpu_custom_call.1} parent=1 // pred_check
      _
    $region11: #{tpu_custom_call.1} parent=1 // pred_check_branch
      %16 = sbr.rel (0) target = $region13
    $region12: #{tpu_custom_call.1} parent=1 // pred_region
      _
    $region13: #{tpu_custom_call.1} parent=1 // pred_fallthru
      _
    // Predicated region
    $region14: #{tpu_custom_call.1} parent=1 // pred_check
      _
    $region15: #{tpu_custom_call.1} parent=1 // pred_check_branch
      %18 = sbr.rel (0) target = $region17
    $region16: #{tpu_custom_call.1} parent=1 // pred_region
      _
    $region17: #{tpu_custom_call.1} parent=1 // pred_fallthru
      _
    // Predicated region
    $region18: #{tpu_custom_call.1} parent=1 // pred_check
      _
    $region19: #{tpu_custom_call.1} parent=1 // pred_check_branch
      %20 = sbr.rel (0) target = $region21
    $region20: #{tpu_custom_call.1} parent=1 // pred_region
      _
    $region21: #{tpu_custom_call.1} parent=1 // pred_fallthru
      _
    %p22 = scmp.eq.s32.totalorder 0, 0
    // Predicated region
    $region22: #{tpu_custom_call.1} parent=1 // pred_check
      %p23 = pneg %p22
    $region23: #{tpu_custom_call.1} parent=1 // pred_check_branch
      %25 = sbr.rel (%p23) target = $region25
    $region24: #{tpu_custom_call.1} parent=1 // pred_region
      %v26 = vld [vmem:[%s1] sm:$0xff]
      %v27 = vld [vmem:[%s1 + $0x8] sm:$0xff]
      %v28 = vld [vmem:[%s1 + $0x10] sm:$0xff]
      %v29 = vld [vmem:[%s1 + $0x18] sm:$0xff]
      %v30 = vld [vmem:[%s1 + $0x20] sm:$0xff]
      %v31 = vld [vmem:[%s1 + $0x28] sm:$0xff]
      %v32 = vld [vmem:[%s1 + $0x30] sm:$0xff]
      %v33 = vld [vmem:[%s1 + $0x38] sm:$0xff]
      %v34 = vld [vmem:[%s1 + $0x40] sm:$0xff]
      %v35 = vld [vmem:[%s1 + $0x48] sm:$0xff]
      %v36 = vld [vmem:[%s1 + $0x50] sm:$0xff]
      %v37 = vld [vmem:[%s1 + $0x58] sm:$0xff]
      %v38 = vld [vmem:[%s1 + $0x60] sm:$0xff]
      %v39 = vld [vmem:[%s1 + $0x68] sm:$0xff]
      %v40 = vld [vmem:[%s1 + $0x70] sm:$0xff]
      %v41 = vld [vmem:[%s1 + $0x78] sm:$0xff]
      %v42 = vand.u32 %v26, 15
      %v43 = vand.u32 %v27, 15
      %v44 = vand.u32 %v28, 15
      %v45 = vand.u32 %v29, 15
      %v46 = vand.u32 %v30, 15
      %v47 = vand.u32 %v31, 15
      %v48 = vand.u32 %v32, 15
      %v49 = vand.u32 %v33, 15
      %v50 = vand.u32 %v34, 15
      %v51 = vand.u32 %v35, 15
      %v52 = vand.u32 %v36, 15
      %v53 = vand.u32 %v37, 15
      %v54 = vand.u32 %v38, 15
      %v55 = vand.u32 %v39, 15
      %v56 = vand.u32 %v40, 15
      %v57 = vand.u32 %v41, 15
      %v58 = vcvt.s32.f32 %v42
      %v59 = vcvt.s32.f32 %v43
      %v60 = vcvt.s32.f32 %v44
      %v61 = vcvt.s32.f32 %v45
      %v62 = vcvt.s32.f32 %v46
      %v63 = vcvt.s32.f32 %v47
      %v64 = vcvt.s32.f32 %v48
      %v65 = vcvt.s32.f32 %v49
      %v66 = vcvt.s32.f32 %v50
      %v67 = vcvt.s32.f32 %v51
      %v68 = vcvt.s32.f32 %v52
      %v69 = vcvt.s32.f32 %v53
      %v70 = vcvt.s32.f32 %v54
      %v71 = vcvt.s32.f32 %v55
      %v72 = vcvt.s32.f32 %v56
      %v73 = vcvt.s32.f32 %v57
      %v74 = vld [vmem:[%s2] sm:$0xf]
      %v77 = vunpack.c.l.s4 1966171168
      %v78 = vunpack.c.0.s8 %v77
      %v79 = vlaneseq
      %v80 = vshrl.u32 %v79, 7
      %v81 = vsub.s32 %v78, %v80
      %v82 = vrot.slane %v74, %v81
      %v83 = vcombine.high %v82, %v82
      %v85 = vunpack.c.l.s4 1966171168
      %v86 = vunpack.c.0.s8 %v85
      %v87 = vlaneseq
      %v88 = vshrl.u32 %v87, 7
      %v89 = vsub.s32 %v86, %v88
      %v90 = vrot.slane %v82, %v89
      %v92 = vunpack.c.l.s4 1966171168
      %v93 = vunpack.c.0.s8 %v92
      %v94 = vlaneseq
      %v95 = vshrl.u32 %v94, 7
      %v96 = vsub.s32 %v93, %v95
      %v97 = vrot.slane %v83, %v96
      %v98 = vcombine.high %v90, %v90
      %v99 = vcombine.high %v97, %v97
      %v100 = vld [vmem:[%s3] sm:$0xf]
      %v103 = vunpack.c.l.s4 1966171168
      %v104 = vunpack.c.0.s8 %v103
      %v105 = vlaneseq
      %v106 = vshrl.u32 %v105, 7
      %v107 = vsub.s32 %v104, %v106
      %v108 = vrot.slane %v100, %v107
      %v109 = vcombine.high %v108, %v108
      %v111 = vunpack.c.l.s4 1966171168
      %v112 = vunpack.c.0.s8 %v111
      %v113 = vlaneseq
      %v114 = vshrl.u32 %v113, 7
      %v115 = vsub.s32 %v112, %v114
      %v116 = vrot.slane %v108, %v115
      %v118 = vunpack.c.l.s4 1966171168
      %v119 = vunpack.c.0.s8 %v118
      %v120 = vlaneseq
      %v121 = vshrl.u32 %v120, 7
      %v122 = vsub.s32 %v119, %v121
      %v123 = vrot.slane %v109, %v122
      %v124 = vcombine.high %v116, %v116
      %v125 = vcombine.high %v123, %v123
      %v126 = vlaneseq
      %v127 = vshrl.u32 %v126, 7
      %v128 = vsub.s32 0, %v127
      %v129 = vrot.slane %v90, %v128
      %v130 = vlaneseq
      %v131 = vshrl.u32 %v130, 7
      %v132 = vsub.s32 0, %v131
      %v133 = vrot.slane %v97, %v132
      %v134 = vlaneseq
      %v135 = vshrl.u32 %v134, 7
      %v136 = vsub.s32 0, %v135
      %v137 = vrot.slane %v98, %v136
      %v138 = vlaneseq
      %v139 = vshrl.u32 %v138, 7
      %v140 = vsub.s32 0, %v139
      %v141 = vrot.slane %v99, %v140
      %v146 = vmul.f32 %v58, %v129
      %v147 = vmul.f32 %v59, %v129
      %v148 = vmul.f32 %v60, %v129
      %v149 = vmul.f32 %v61, %v129
      %v150 = vmul.f32 %v62, %v133
      %v151 = vmul.f32 %v63, %v133
      %v152 = vmul.f32 %v64, %v133
      %v153 = vmul.f32 %v65, %v133
      %v154 = vmul.f32 %v66, %v137
      %v155 = vmul.f32 %v67, %v137
      %v156 = vmul.f32 %v68, %v137
      %v157 = vmul.f32 %v69, %v137
      %v158 = vmul.f32 %v70, %v141
      %v159 = vmul.f32 %v71, %v141
      %v160 = vmul.f32 %v72, %v141
      %v161 = vmul.f32 %v73, %v141
      %v162 = vlaneseq
      %v163 = vshrl.u32 %v162, 7
      %v164 = vsub.s32 0, %v163
      %v165 = vrot.slane %v116, %v164
      %v166 = vlaneseq
      %v167 = vshrl.u32 %v166, 7
      %v168 = vsub.s32 0, %v167
      %v169 = vrot.slane %v123, %v168
      %v170 = vlaneseq
      %v171 = vshrl.u32 %v170, 7
      %v172 = vsub.s32 0, %v171
      %v173 = vrot.slane %v124, %v172
      %v174 = vlaneseq
      %v175 = vshrl.u32 %v174, 7
      %v176 = vsub.s32 0, %v175
      %v177 = vrot.slane %v125, %v176
      %v182 = vsub.f32 %v146, %v165
      %v183 = vsub.f32 %v147, %v165
      %v184 = vsub.f32 %v148, %v165
      %v185 = vsub.f32 %v149, %v165
      %v186 = vsub.f32 %v150, %v169
      %v187 = vsub.f32 %v151, %v169
      %v188 = vsub.f32 %v152, %v169
      %v189 = vsub.f32 %v153, %v169
      %v190 = vsub.f32 %v154, %v173
      %v191 = vsub.f32 %v155, %v173
      %v192 = vsub.f32 %v156, %v173
      %v193 = vsub.f32 %v157, %v173
      %v194 = vsub.f32 %v158, %v177
      %v195 = vsub.f32 %v159, %v177
      %v196 = vsub.f32 %v160, %v177
      %v197 = vsub.f32 %v161, %v177
      %v198 = vpack.c.bf16 %v183, %v182
      %v199 = vpack.c.bf16 %v185, %v184
      %v200 = vpack.c.bf16 %v187, %v186
      %v201 = vpack.c.bf16 %v189, %v188
      %v202 = vpack.c.bf16 %v191, %v190
      %v203 = vpack.c.bf16 %v193, %v192
      %v204 = vpack.c.bf16 %v195, %v194
      %v205 = vpack.c.bf16 %v197, %v196
      %vm206 = vcmask 130048
      %207 = vst.msk [vmem:[#allocation2] sm:$0xff] %vm206, %v198
      %208 = vst.msk [vmem:[#allocation2 + $0x8] sm:$0xff] %vm206, %v199
      %209 = vst.msk [vmem:[#allocation2 + $0x10] sm:$0xff] %vm206, %v200
      %210 = vst.msk [vmem:[#allocation2 + $0x18] sm:$0xff] %vm206, %v201
      %211 = vst.msk [vmem:[#allocation2 + $0x20] sm:$0xff] %vm206, %v202
      %212 = vst.msk [vmem:[#allocation2 + $0x28] sm:$0xff] %vm206, %v203
      %213 = vst.msk [vmem:[#allocation2 + $0x30] sm:$0xff] %vm206, %v204
      %214 = vst.msk [vmem:[#allocation2 + $0x38] sm:$0xff] %vm206, %v205
      %v215 = vshra.s32 %v26, 4
      %v216 = vshra.s32 %v27, 4
      %v217 = vshra.s32 %v28, 4
      %v218 = vshra.s32 %v29, 4
      %v219 = vshra.s32 %v30, 4
      %v220 = vshra.s32 %v31, 4
      %v221 = vshra.s32 %v32, 4
      %v222 = vshra.s32 %v33, 4
      %v223 = vshra.s32 %v34, 4
      %v224 = vshra.s32 %v35, 4
      %v225 = vshra.s32 %v36, 4
      %v226 = vshra.s32 %v37, 4
      %v227 = vshra.s32 %v38, 4
      %v228 = vshra.s32 %v39, 4
      %v229 = vshra.s32 %v40, 4
      %v230 = vshra.s32 %v41, 4
      %v231 = vand.u32 %v215, 15
      %v232 = vand.u32 %v216, 15
      %v233 = vand.u32 %v217, 15
      %v234 = vand.u32 %v218, 15
      %v235 = vand.u32 %v219, 15
      %v236 = vand.u32 %v220, 15
      %v237 = vand.u32 %v221, 15
      %v238 = vand.u32 %v222, 15
      %v239 = vand.u32 %v223, 15
      %v240 = vand.u32 %v224, 15
      %v241 = vand.u32 %v225, 15
      %v242 = vand.u32 %v226, 15
      %v243 = vand.u32 %v227, 15
      %v244 = vand.u32 %v228, 15
      %v245 = vand.u32 %v229, 15
      %v246 = vand.u32 %v230, 15
      %v247 = vcvt.s32.f32 %v231
      %v248 = vcvt.s32.f32 %v232
      %v249 = vcvt.s32.f32 %v233
      %v250 = vcvt.s32.f32 %v234
      %v251 = vcvt.s32.f32 %v235
      %v252 = vcvt.s32.f32 %v236
      %v253 = vcvt.s32.f32 %v237
      %v254 = vcvt.s32.f32 %v238
      %v255 = vcvt.s32.f32 %v239
      %v256 = vcvt.s32.f32 %v240
      %v257 = vcvt.s32.f32 %v241
      %v258 = vcvt.s32.f32 %v242
      %v259 = vcvt.s32.f32 %v243
      %v260 = vcvt.s32.f32 %v244
      %v261 = vcvt.s32.f32 %v245
      %v262 = vcvt.s32.f32 %v246
      %v263 = vld [vmem:[%s2] sm:$0xf]
      %v266 = vunpack.c.l.s4 1966171168
      %v267 = vunpack.c.0.s8 %v266
      %v268 = vlaneseq
      %v269 = vshrl.u32 %v268, 7
      %v270 = vsub.s32 %v267, %v269
      %v271 = vrot.slane %v263, %v270
      %v272 = vcombine.high %v271, %v271
      %v274 = vunpack.c.l.s4 1966171168
      %v275 = vunpack.c.0.s8 %v274
      %v276 = vlaneseq
      %v277 = vshrl.u32 %v276, 7
      %v278 = vsub.s32 %v275, %v277
      %v279 = vrot.slane %v271, %v278
      %v281 = vunpack.c.l.s4 1966171168
      %v282 = vunpack.c.0.s8 %v281
      %v283 = vlaneseq
      %v284 = vshrl.u32 %v283, 7
      %v285 = vsub.s32 %v282, %v284
      %v286 = vrot.slane %v272, %v285
      %v287 = vcombine.high %v279, %v279
      %v288 = vcombine.high %v286, %v286
      %v289 = vld [vmem:[%s3] sm:$0xf]
      %v292 = vunpack.c.l.s4 1966171168
      %v293 = vunpack.c.0.s8 %v292
      %v294 = vlaneseq
      %v295 = vshrl.u32 %v294, 7
      %v296 = vsub.s32 %v293, %v295
      %v297 = vrot.slane %v289, %v296
      %v298 = vcombine.high %v297, %v297
      %v300 = vunpack.c.l.s4 1966171168
      %v301 = vunpack.c.0.s8 %v300
      %v302 = vlaneseq
      %v303 = vshrl.u32 %v302, 7
      %v304 = vsub.s32 %v301, %v303
      %v305 = vrot.slane %v297, %v304
      %v307 = vunpack.c.l.s4 1966171168
      %v308 = vunpack.c.0.s8 %v307
      %v309 = vlaneseq
      %v310 = vshrl.u32 %v309, 7
      %v311 = vsub.s32 %v308, %v310
      %v312 = vrot.slane %v298, %v311
      %v313 = vcombine.high %v305, %v305
      %v314 = vcombine.high %v312, %v312
      %v315 = vlaneseq
      %v316 = vshrl.u32 %v315, 7
      %v317 = vsub.s32 0, %v316
      %v318 = vrot.slane %v279, %v317
      %v319 = vlaneseq
      %v320 = vshrl.u32 %v319, 7
      %v321 = vsub.s32 0, %v320
      %v322 = vrot.slane %v286, %v321
      %v323 = vlaneseq
      %v324 = vshrl.u32 %v323, 7
      %v325 = vsub.s32 0, %v324
      %v326 = vrot.slane %v287, %v325
      %v327 = vlaneseq
      %v328 = vshrl.u32 %v327, 7
      %v329 = vsub.s32 0, %v328
      %v330 = vrot.slane %v288, %v329
      %331 = vrot.lane.b32.xlu0 %v318, 112
      %v332 = vpop.permute.xlu0 %331
      %333 = vrot.lane.b32.xlu0 %v322, 112
      %v334 = vpop.permute.xlu0 %333
      %335 = vrot.lane.b32.xlu0 %v326, 112
      %v336 = vpop.permute.xlu0 %335
      %337 = vrot.lane.b32.xlu0 %v330, 112
      %v338 = vpop.permute.xlu0 %337
      %v343 = vmul.f32 %v247, %v332
      %v344 = vmul.f32 %v248, %v332
      %v345 = vmul.f32 %v249, %v332
      %v346 = vmul.f32 %v250, %v332
      %v347 = vmul.f32 %v251, %v334
      %v348 = vmul.f32 %v252, %v334
      %v349 = vmul.f32 %v253, %v334
      %v350 = vmul.f32 %v254, %v334
      %v351 = vmul.f32 %v255, %v336
      %v352 = vmul.f32 %v256, %v336
      %v353 = vmul.f32 %v257, %v336
      %v354 = vmul.f32 %v258, %v336
      %v355 = vmul.f32 %v259, %v338
      %v356 = vmul.f32 %v260, %v338
      %v357 = vmul.f32 %v261, %v338
      %v358 = vmul.f32 %v262, %v338
      %v359 = vlaneseq
      %v360 = vshrl.u32 %v359, 7
      %v361 = vsub.s32 0, %v360
      %v362 = vrot.slane %v305, %v361
      %v363 = vlaneseq
      %v364 = vshrl.u32 %v363, 7
      %v365 = vsub.s32 0, %v364
      %v366 = vrot.slane %v312, %v365
      %v367 = vlaneseq
      %v368 = vshrl.u32 %v367, 7
      %v369 = vsub.s32 0, %v368
      %v370 = vrot.slane %v313, %v369
      %v371 = vlaneseq
      %v372 = vshrl.u32 %v371, 7
      %v373 = vsub.s32 0, %v372
      %v374 = vrot.slane %v314, %v373
      %375 = vrot.lane.b32.xlu0 %v362, 112
      %v376 = vpop.permute.xlu0 %375
      %377 = vrot.lane.b32.xlu0 %v366, 112
      %v378 = vpop.permute.xlu0 %377
      %379 = vrot.lane.b32.xlu0 %v370, 112
      %v380 = vpop.permute.xlu0 %379
      %381 = vrot.lane.b32.xlu0 %v374, 112
      %v382 = vpop.permute.xlu0 %381
      %v387 = vsub.f32 %v343, %v376
      %v388 = vsub.f32 %v344, %v376
      %v389 = vsub.f32 %v345, %v376
      %v390 = vsub.f32 %v346, %v376
      %v391 = vsub.f32 %v347, %v378
      %v392 = vsub.f32 %v348, %v378
      %v393 = vsub.f32 %v349, %v378
      %v394 = vsub.f32 %v350, %v378
      %v395 = vsub.f32 %v351, %v380
      %v396 = vsub.f32 %v352, %v380
      %v397 = vsub.f32 %v353, %v380
      %v398 = vsub.f32 %v354, %v380
      %v399 = vsub.f32 %v355, %v382
      %v400 = vsub.f32 %v356, %v382
      %v401 = vsub.f32 %v357, %v382
      %v402 = vsub.f32 %v358, %v382
      %v403 = vpack.c.bf16 %v388, %v387
      %v404 = vpack.c.bf16 %v390, %v389
      %v405 = vpack.c.bf16 %v392, %v391
      %v406 = vpack.c.bf16 %v394, %v393
      %v407 = vpack.c.bf16 %v396, %v395
      %v408 = vpack.c.bf16 %v398, %v397
      %v409 = vpack.c.bf16 %v400, %v399
      %v410 = vpack.c.bf16 %v402, %v401
      %419 = vrot.lane.b32.xlu0 %v403, 16
      %v420 = vpop.permute.xlu0 %419
      %421 = vrot.lane.b32.xlu0 %v404, 16
      %v422 = vpop.permute.xlu0 %421
      %423 = vrot.lane.b32.xlu0 %v405, 16
      %v424 = vpop.permute.xlu0 %423
      %425 = vrot.lane.b32.xlu0 %v406, 16
      %v426 = vpop.permute.xlu0 %425
      %427 = vrot.lane.b32.xlu0 %v407, 16
      %v428 = vpop.permute.xlu0 %427
      %429 = vrot.lane.b32.xlu0 %v408, 16
      %v430 = vpop.permute.xlu0 %429
      %431 = vrot.lane.b32.xlu0 %v409, 16
      %v432 = vpop.permute.xlu0 %431
      %433 = vrot.lane.b32.xlu0 %v410, 16
      %v434 = vpop.permute.xlu0 %433
      %vm443 = vcmask 261248
      %444 = vst.msk [vmem:[#allocation2] sm:$0xff] %vm443, %v420
      %445 = vst.msk [vmem:[#allocation2 + $0x8] sm:$0xff] %vm443, %v422
      %446 = vst.msk [vmem:[#allocation2 + $0x10] sm:$0xff] %vm443, %v424
      %447 = vst.msk [vmem:[#allocation2 + $0x18] sm:$0xff] %vm443, %v426
      %448 = vst.msk [vmem:[#allocation2 + $0x20] sm:$0xff] %vm443, %v428
      %449 = vst.msk [vmem:[#allocation2 + $0x28] sm:$0xff] %vm443, %v430
      %450 = vst.msk [vmem:[#allocation2 + $0x30] sm:$0xff] %vm443, %v432
      %451 = vst.msk [vmem:[#allocation2 + $0x38] sm:$0xff] %vm443, %v434
      %v452 = vshra.s32 %v26, 8
      %v453 = vshra.s32 %v27, 8
      %v454 = vshra.s32 %v28, 8
      %v455 = vshra.s32 %v29, 8
      %v456 = vshra.s32 %v30, 8
      %v457 = vshra.s32 %v31, 8
      %v458 = vshra.s32 %v32, 8
      %v459 = vshra.s32 %v33, 8
      %v460 = vshra.s32 %v34, 8
      %v461 = vshra.s32 %v35, 8
      %v462 = vshra.s32 %v36, 8
      %v463 = vshra.s32 %v37, 8
      %v464 = vshra.s32 %v38, 8
      %v465 = vshra.s32 %v39, 8
      %v466 = vshra.s32 %v40, 8
      %v467 = vshra.s32 %v41, 8
      %v468 = vand.u32 %v452, 15
      %v469 = vand.u32 %v453, 15
      %v470 = vand.u32 %v454, 15
      %v471 = vand.u32 %v455, 15
      %v472 = vand.u32 %v456, 15
      %v473 = vand.u32 %v457, 15
      %v474 = vand.u32 %v458, 15
      %v475 = vand.u32 %v459, 15
      %v476 = vand.u32 %v460, 15
      %v477 = vand.u32 %v461, 15
      %v478 = vand.u32 %v462, 15
      %v479 = vand.u32 %v463, 15
      %v480 = vand.u32 %v464, 15
      %v481 = vand.u32 %v465, 15
      %v482 = vand.u32 %v466, 15
      %v483 = vand.u32 %v467, 15
      %v484 = vcvt.s32.f32 %v468
      %v485 = vcvt.s32.f32 %v469
      %v486 = vcvt.s32.f32 %v470
      %v487 = vcvt.s32.f32 %v471
      %v488 = vcvt.s32.f32 %v472
      %v489 = vcvt.s32.f32 %v473
      %v490 = vcvt.s32.f32 %v474
      %v491 = vcvt.s32.f32 %v475
      %v492 = vcvt.s32.f32 %v476
      %v493 = vcvt.s32.f32 %v477
      %v494 = vcvt.s32.f32 %v478
      %v495 = vcvt.s32.f32 %v479
      %v496 = vcvt.s32.f32 %v480
      %v497 = vcvt.s32.f32 %v481
      %v498 = vcvt.s32.f32 %v482
      %v499 = vcvt.s32.f32 %v483
      %v500 = vld [vmem:[%s2] sm:$0xf]
      %v503 = vunpack.c.l.s4 1966171168
      %v504 = vunpack.c.0.s8 %v503
      %v505 = vlaneseq
      %v506 = vshrl.u32 %v505, 7
      %v507 = vsub.s32 %v504, %v506
      %v508 = vrot.slane %v500, %v507
      %v509 = vcombine.high %v508, %v508
      %v511 = vunpack.c.l.s4 1966171168
      %v512 = vunpack.c.0.s8 %v511
      %v513 = vlaneseq
      %v514 = vshrl.u32 %v513, 7
      %v515 = vsub.s32 %v512, %v514
      %v516 = vrot.slane %v508, %v515
      %v518 = vunpack.c.l.s4 1966171168
      %v519 = vunpack.c.0.s8 %v518
      %v520 = vlaneseq
      %v521 = vshrl.u32 %v520, 7
      %v522 = vsub.s32 %v519, %v521
      %v523 = vrot.slane %v509, %v522
      %v524 = vcombine.high %v516, %v516
      %v525 = vcombine.high %v523, %v523
      %v526 = vld [vmem:[%s3] sm:$0xf]
      %v529 = vunpack.c.l.s4 1966171168
      %v530 = vunpack.c.0.s8 %v529
      %v531 = vlaneseq
      %v532 = vshrl.u32 %v531, 7
      %v533 = vsub.s32 %v530, %v532
      %v534 = vrot.slane %v526, %v533
      %v535 = vcombine.high %v534, %v534
      %v537 = vunpack.c.l.s4 1966171168
      %v538 = vunpack.c.0.s8 %v537
      %v539 = vlaneseq
      %v540 = vshrl.u32 %v539, 7
      %v541 = vsub.s32 %v538, %v540
      %v542 = vrot.slane %v534, %v541
      %v544 = vunpack.c.l.s4 1966171168
      %v545 = vunpack.c.0.s8 %v544
      %v546 = vlaneseq
      %v547 = vshrl.u32 %v546, 7
      %v548 = vsub.s32 %v545, %v547
      %v549 = vrot.slane %v535, %v548
      %v550 = vcombine.high %v542, %v542
      %v551 = vcombine.high %v549, %v549
      %v552 = vlaneseq
      %v553 = vshrl.u32 %v552, 7
      %v554 = vsub.s32 0, %v553
      %v555 = vrot.slane %v516, %v554
      %v556 = vlaneseq
      %v557 = vshrl.u32 %v556, 7
      %v558 = vsub.s32 0, %v557
      %v559 = vrot.slane %v523, %v558
      %v560 = vlaneseq
      %v561 = vshrl.u32 %v560, 7
      %v562 = vsub.s32 0, %v561
      %v563 = vrot.slane %v524, %v562
      %v564 = vlaneseq
      %v565 = vshrl.u32 %v564, 7
      %v566 = vsub.s32 0, %v565
      %v567 = vrot.slane %v525, %v566
      %568 = vrot.lane.b32.xlu0 %v555, 96
      %v569 = vpop.permute.xlu0 %568
      %570 = vrot.lane.b32.xlu0 %v559, 96
      %v571 = vpop.permute.xlu0 %570
      %572 = vrot.lane.b32.xlu0 %v563, 96
      %v573 = vpop.permute.xlu0 %572
      %574 = vrot.lane.b32.xlu0 %v567, 96
      %v575 = vpop.permute.xlu0 %574
      %v580 = vmul.f32 %v484, %v569
      %v581 = vmul.f32 %v485, %v569
      %v582 = vmul.f32 %v486, %v569
      %v583 = vmul.f32 %v487, %v569
      %v584 = vmul.f32 %v488, %v571
      %v585 = vmul.f32 %v489, %v571
      %v586 = vmul.f32 %v490, %v571
      %v587 = vmul.f32 %v491, %v571
      %v588 = vmul.f32 %v492, %v573
      %v589 = vmul.f32 %v493, %v573
      %v590 = vmul.f32 %v494, %v573
      %v591 = vmul.f32 %v495, %v573
      %v592 = vmul.f32 %v496, %v575
      %v593 = vmul.f32 %v497, %v575
      %v594 = vmul.f32 %v498, %v575
      %v595 = vmul.f32 %v499, %v575
      %v596 = vlaneseq
      %v597 = vshrl.u32 %v596, 7
      %v598 = vsub.s32 0, %v597
      %v599 = vrot.slane %v542, %v598
      %v600 = vlaneseq
      %v601 = vshrl.u32 %v600, 7
      %v602 = vsub.s32 0, %v601
      %v603 = vrot.slane %v549, %v602
      %v604 = vlaneseq
      %v605 = vshrl.u32 %v604, 7
      %v606 = vsub.s32 0, %v605
      %v607 = vrot.slane %v550, %v606
      %v608 = vlaneseq
      %v609 = vshrl.u32 %v608, 7
      %v610 = vsub.s32 0, %v609
      %v611 = vrot.slane %v551, %v610
      %612 = vrot.lane.b32.xlu0 %v599, 96
      %v613 = vpop.permute.xlu0 %612
      %614 = vrot.lane.b32.xlu0 %v603, 96
      %v615 = vpop.permute.xlu0 %614
      %616 = vrot.lane.b32.xlu0 %v607, 96
      %v617 = vpop.permute.xlu0 %616
      %618 = vrot.lane.b32.xlu0 %v611, 96
      %v619 = vpop.permute.xlu0 %618
      %v624 = vsub.f32 %v580, %v613
      %v625 = vsub.f32 %v581, %v613
      %v626 = vsub.f32 %v582, %v613
      %v627 = vsub.f32 %v583, %v613
      %v628 = vsub.f32 %v584, %v615
      %v629 = vsub.f32 %v585, %v615
      %v630 = vsub.f32 %v586, %v615
      %v631 = vsub.f32 %v587, %v615
      %v632 = vsub.f32 %v588, %v617
      %v633 = vsub.f32 %v589, %v617
      %v634 = vsub.f32 %v590, %v617
      %v635 = vsub.f32 %v591, %v617
      %v636 = vsub.f32 %v592, %v619
      %v637 = vsub.f32 %v593, %v619
      %v638 = vsub.f32 %v594, %v619
      %v639 = vsub.f32 %v595, %v619
      %v640 = vpack.c.bf16 %v625, %v624
      %v641 = vpack.c.bf16 %v627, %v626
      %v642 = vpack.c.bf16 %v629, %v628
      %v643 = vpack.c.bf16 %v631, %v630
      %v644 = vpack.c.bf16 %v633, %v632
      %v645 = vpack.c.bf16 %v635, %v634
      %v646 = vpack.c.bf16 %v637, %v636
      %v647 = vpack.c.bf16 %v639, %v638
      %656 = vrot.lane.b32.xlu0 %v640, 32
      %v657 = vpop.permute.xlu0 %656
      %658 = vrot.lane.b32.xlu0 %v641, 32
      %v659 = vpop.permute.xlu0 %658
      %660 = vrot.lane.b32.xlu0 %v642, 32
      %v661 = vpop.permute.xlu0 %660
      %662 = vrot.lane.b32.xlu0 %v643, 32
      %v663 = vpop.permute.xlu0 %662
      %664 = vrot.lane.b32.xlu0 %v644, 32
      %v665 = vpop.permute.xlu0 %664
      %666 = vrot.lane.b32.xlu0 %v645, 32
      %v667 = vpop.permute.xlu0 %666
      %668 = vrot.lane.b32.xlu0 %v646, 32
      %v669 = vpop.permute.xlu0 %668
      %670 = vrot.lane.b32.xlu0 %v647, 32
      %v671 = vpop.permute.xlu0 %670
      %vm680 = vcmask 392448
      %681 = vst.msk [vmem:[#allocation2] sm:$0xff] %vm680, %v657
      %682 = vst.msk [vmem:[#allocation2 + $0x8] sm:$0xff] %vm680, %v659
      %683 = vst.msk [vmem:[#allocation2 + $0x10] sm:$0xff] %vm680, %v661
      %684 = vst.msk [vmem:[#allocation2 + $0x18] sm:$0xff] %vm680, %v663
      %685 = vst.msk [vmem:[#allocation2 + $0x20] sm:$0xff] %vm680, %v665
      %686 = vst.msk [vmem:[#allocation2 + $0x28] sm:$0xff] %vm680, %v667
      %687 = vst.msk [vmem:[#allocation2 + $0x30] sm:$0xff] %vm680, %v669
      %688 = vst.msk [vmem:[#allocation2 + $0x38] sm:$0xff] %vm680, %v671
      %v689 = vshra.s32 %v26, 12
      %v690 = vshra.s32 %v27, 12
      %v691 = vshra.s32 %v28, 12
      %v692 = vshra.s32 %v29, 12
      %v693 = vshra.s32 %v30, 12
      %v694 = vshra.s32 %v31, 12
      %v695 = vshra.s32 %v32, 12
      %v696 = vshra.s32 %v33, 12
      %v697 = vshra.s32 %v34, 12
      %v698 = vshra.s32 %v35, 12
      %v699 = vshra.s32 %v36, 12
      %v700 = vshra.s32 %v37, 12
      %v701 = vshra.s32 %v38, 12
      %v702 = vshra.s32 %v39, 12
      %v703 = vshra.s32 %v40, 12
      %v704 = vshra.s32 %v41, 12
      %v705 = vand.u32 %v689, 15
      %v706 = vand.u32 %v690, 15
      %v707 = vand.u32 %v691, 15
      %v708 = vand.u32 %v692, 15
      %v709 = vand.u32 %v693, 15
      %v710 = vand.u32 %v694, 15
      %v711 = vand.u32 %v695, 15
      %v712 = vand.u32 %v696, 15
      %v713 = vand.u32 %v697, 15
      %v714 = vand.u32 %v698, 15
      %v715 = vand.u32 %v699, 15
      %v716 = vand.u32 %v700, 15
      %v717 = vand.u32 %v701, 15
      %v718 = vand.u32 %v702, 15
      %v719 = vand.u32 %v703, 15
      %v720 = vand.u32 %v704, 15
      %v721 = vcvt.s32.f32 %v705
      %v722 = vcvt.s32.f32 %v706
      %v723 = vcvt.s32.f32 %v707
      %v724 = vcvt.s32.f32 %v708
      %v725 = vcvt.s32.f32 %v709
      %v726 = vcvt.s32.f32 %v710
      %v727 = vcvt.s32.f32 %v711
      %v728 = vcvt.s32.f32 %v712
      %v729 = vcvt.s32.f32 %v713
      %v730 = vcvt.s32.f32 %v714
      %v731 = vcvt.s32.f32 %v715
      %v732 = vcvt.s32.f32 %v716
      %v733 = vcvt.s32.f32 %v717
      %v734 = vcvt.s32.f32 %v718
      %v735 = vcvt.s32.f32 %v719
      %v736 = vcvt.s32.f32 %v720
      %v737 = vld [vmem:[%s2] sm:$0xf]
      %v740 = vunpack.c.l.s4 1966171168
      %v741 = vunpack.c.0.s8 %v740
      %v742 = vlaneseq
      %v743 = vshrl.u32 %v742, 7
      %v744 = vsub.s32 %v741, %v743
      %v745 = vrot.slane %v737, %v744
      %v746 = vcombine.high %v745, %v745
      %v748 = vunpack.c.l.s4 1966171168
      %v749 = vunpack.c.0.s8 %v748
      %v750 = vlaneseq
      %v751 = vshrl.u32 %v750, 7
      %v752 = vsub.s32 %v749, %v751
      %v753 = vrot.slane %v745, %v752
      %v755 = vunpack.c.l.s4 1966171168
      %v756 = vunpack.c.0.s8 %v755
      %v757 = vlaneseq
      %v758 = vshrl.u32 %v757, 7
      %v759 = vsub.s32 %v756, %v758
      %v760 = vrot.slane %v746, %v759
      %v761 = vcombine.high %v753, %v753
      %v762 = vcombine.high %v760, %v760
      %v763 = vld [vmem:[%s3] sm:$0xf]
      %v766 = vunpack.c.l.s4 1966171168
      %v767 = vunpack.c.0.s8 %v766
      %v768 = vlaneseq
      %v769 = vshrl.u32 %v768, 7
      %v770 = vsub.s32 %v767, %v769
      %v771 = vrot.slane %v763, %v770
      %v772 = vcombine.high %v771, %v771
      %v774 = vunpack.c.l.s4 1966171168
      %v775 = vunpack.c.0.s8 %v774
      %v776 = vlaneseq
      %v777 = vshrl.u32 %v776, 7
      %v778 = vsub.s32 %v775, %v777
      %v779 = vrot.slane %v771, %v778
      %v781 = vunpack.c.l.s4 1966171168
      %v782 = vunpack.c.0.s8 %v781
      %v783 = vlaneseq
      %v784 = vshrl.u32 %v783, 7
      %v785 = vsub.s32 %v782, %v784
      %v786 = vrot.slane %v772, %v785
      %v787 = vcombine.high %v779, %v779
      %v788 = vcombine.high %v786, %v786
      %v789 = vlaneseq
      %v790 = vshrl.u32 %v789, 7
      %v791 = vsub.s32 0, %v790
      %v792 = vrot.slane %v753, %v791
      %v793 = vlaneseq
      %v794 = vshrl.u32 %v793, 7
      %v795 = vsub.s32 0, %v794
      %v796 = vrot.slane %v760, %v795
      %v797 = vlaneseq
      %v798 = vshrl.u32 %v797, 7
      %v799 = vsub.s32 0, %v798
      %v800 = vrot.slane %v761, %v799
      %v801 = vlaneseq
      %v802 = vshrl.u32 %v801, 7
      %v803 = vsub.s32 0, %v802
      %v804 = vrot.slane %v762, %v803
      %805 = vrot.lane.b32.xlu0 %v792, 80
      %v806 = vpop.permute.xlu0 %805
      %807 = vrot.lane.b32.xlu0 %v796, 80
      %v808 = vpop.permute.xlu0 %807
      %809 = vrot.lane.b32.xlu0 %v800, 80
      %v810 = vpop.permute.xlu0 %809
      %811 = vrot.lane.b32.xlu0 %v804, 80
      %v812 = vpop.permute.xlu0 %811
      %v817 = vmul.f32 %v721, %v806
      %v818 = vmul.f32 %v722, %v806
      %v819 = vmul.f32 %v723, %v806
      %v820 = vmul.f32 %v724, %v806
      %v821 = vmul.f32 %v725, %v808
      %v822 = vmul.f32 %v726, %v808
      %v823 = vmul.f32 %v727, %v808
      %v824 = vmul.f32 %v728, %v808
      %v825 = vmul.f32 %v729, %v810
      %v826 = vmul.f32 %v730, %v810
      %v827 = vmul.f32 %v731, %v810
      %v828 = vmul.f32 %v732, %v810
      %v829 = vmul.f32 %v733, %v812
      %v830 = vmul.f32 %v734, %v812
      %v831 = vmul.f32 %v735, %v812
      %v832 = vmul.f32 %v736, %v812
      %v833 = vlaneseq
      %v834 = vshrl.u32 %v833, 7
      %v835 = vsub.s32 0, %v834
      %v836 = vrot.slane %v779, %v835
      %v837 = vlaneseq
      %v838 = vshrl.u32 %v837, 7
      %v839 = vsub.s32 0, %v838
      %v840 = vrot.slane %v786, %v839
      %v841 = vlaneseq
      %v842 = vshrl.u32 %v841, 7
      %v843 = vsub.s32 0, %v842
      %v844 = vrot.slane %v787, %v843
      %v845 = vlaneseq
      %v846 = vshrl.u32 %v845, 7
      %v847 = vsub.s32 0, %v846
      %v848 = vrot.slane %v788, %v847
      %849 = vrot.lane.b32.xlu0 %v836, 80
      %v850 = vpop.permute.xlu0 %849
      %851 = vrot.lane.b32.xlu0 %v840, 80
      %v852 = vpop.permute.xlu0 %851
      %853 = vrot.lane.b32.xlu0 %v844, 80
      %v854 = vpop.permute.xlu0 %853
      %855 = vrot.lane.b32.xlu0 %v848, 80
      %v856 = vpop.permute.xlu0 %855
      %v861 = vsub.f32 %v817, %v850
      %v862 = vsub.f32 %v818, %v850
      %v863 = vsub.f32 %v819, %v850
      %v864 = vsub.f32 %v820, %v850
      %v865 = vsub.f32 %v821, %v852
      %v866 = vsub.f32 %v822, %v852
      %v867 = vsub.f32 %v823, %v852
      %v868 = vsub.f32 %v824, %v852
      %v869 = vsub.f32 %v825, %v854
      %v870 = vsub.f32 %v826, %v854
      %v871 = vsub.f32 %v827, %v854
      %v872 = vsub.f32 %v828, %v854
      %v873 = vsub.f32 %v829, %v856
      %v874 = vsub.f32 %v830, %v856
      %v875 = vsub.f32 %v831, %v856
      %v876 = vsub.f32 %v832, %v856
      %v877 = vpack.c.bf16 %v862, %v861
      %v878 = vpack.c.bf16 %v864, %v863
      %v879 = vpack.c.bf16 %v866, %v865
      %v880 = vpack.c.bf16 %v868, %v867
      %v881 = vpack.c.bf16 %v870, %v869
      %v882 = vpack.c.bf16 %v872, %v871
      %v883 = vpack.c.bf16 %v874, %v873
      %v884 = vpack.c.bf16 %v876, %v875
      %893 = vrot.lane.b32.xlu0 %v877, 48
      %v894 = vpop.permute.xlu0 %893
      %895 = vrot.lane.b32.xlu0 %v878, 48
      %v896 = vpop.permute.xlu0 %895
      %897 = vrot.lane.b32.xlu0 %v879, 48
      %v898 = vpop.permute.xlu0 %897
      %899 = vrot.lane.b32.xlu0 %v880, 48
      %v900 = vpop.permute.xlu0 %899
      %901 = vrot.lane.b32.xlu0 %v881, 48
      %v902 = vpop.permute.xlu0 %901
      %903 = vrot.lane.b32.xlu0 %v882, 48
      %v904 = vpop.permute.xlu0 %903
      %905 = vrot.lane.b32.xlu0 %v883, 48
      %v906 = vpop.permute.xlu0 %905
      %907 = vrot.lane.b32.xlu0 %v884, 48
      %v908 = vpop.permute.xlu0 %907
      %vm917 = vcmask 523648
      %918 = vst.msk [vmem:[#allocation2] sm:$0xff] %vm917, %v894
      %919 = vst.msk [vmem:[#allocation2 + $0x8] sm:$0xff] %vm917, %v896
      %920 = vst.msk [vmem:[#allocation2 + $0x10] sm:$0xff] %vm917, %v898
      %921 = vst.msk [vmem:[#allocation2 + $0x18] sm:$0xff] %vm917, %v900
      %922 = vst.msk [vmem:[#allocation2 + $0x20] sm:$0xff] %vm917, %v902
      %923 = vst.msk [vmem:[#allocation2 + $0x28] sm:$0xff] %vm917, %v904
      %924 = vst.msk [vmem:[#allocation2 + $0x30] sm:$0xff] %vm917, %v906
      %925 = vst.msk [vmem:[#allocation2 + $0x38] sm:$0xff] %vm917, %v908
      %v926 = vshra.s32 %v26, 16
      %v927 = vshra.s32 %v27, 16
      %v928 = vshra.s32 %v28, 16
      %v929 = vshra.s32 %v29, 16
      %v930 = vshra.s32 %v30, 16
      %v931 = vshra.s32 %v31, 16
      %v932 = vshra.s32 %v32, 16
      %v933 = vshra.s32 %v33, 16
      %v934 = vshra.s32 %v34, 16
      %v935 = vshra.s32 %v35, 16
      %v936 = vshra.s32 %v36, 16
      %v937 = vshra.s32 %v37, 16
      %v938 = vshra.s32 %v38, 16
      %v939 = vshra.s32 %v39, 16
      %v940 = vshra.s32 %v40, 16
      %v941 = vshra.s32 %v41, 16
      %v942 = vand.u32 %v926, 15
      %v943 = vand.u32 %v927, 15
      %v944 = vand.u32 %v928, 15
      %v945 = vand.u32 %v929, 15
      %v946 = vand.u32 %v930, 15
      %v947 = vand.u32 %v931, 15
      %v948 = vand.u32 %v932, 15
      %v949 = vand.u32 %v933, 15
      %v950 = vand.u32 %v934, 15
      %v951 = vand.u32 %v935, 15
      %v952 = vand.u32 %v936, 15
      %v953 = vand.u32 %v937, 15
      %v954 = vand.u32 %v938, 15
      %v955 = vand.u32 %v939, 15
      %v956 = vand.u32 %v940, 15
      %v957 = vand.u32 %v941, 15
      %v958 = vcvt.s32.f32 %v942
      %v959 = vcvt.s32.f32 %v943
      %v960 = vcvt.s32.f32 %v944
      %v961 = vcvt.s32.f32 %v945
      %v962 = vcvt.s32.f32 %v946
      %v963 = vcvt.s32.f32 %v947
      %v964 = vcvt.s32.f32 %v948
      %v965 = vcvt.s32.f32 %v949
      %v966 = vcvt.s32.f32 %v950
      %v967 = vcvt.s32.f32 %v951
      %v968 = vcvt.s32.f32 %v952
      %v969 = vcvt.s32.f32 %v953
      %v970 = vcvt.s32.f32 %v954
      %v971 = vcvt.s32.f32 %v955
      %v972 = vcvt.s32.f32 %v956
      %v973 = vcvt.s32.f32 %v957
      %v974 = vld [vmem:[%s2] sm:$0xf]
      %v977 = vunpack.c.l.s4 1966171168
      %v978 = vunpack.c.0.s8 %v977
      %v979 = vlaneseq
      %v980 = vshrl.u32 %v979, 7
      %v981 = vsub.s32 %v978, %v980
      %v982 = vrot.slane %v974, %v981
      %v983 = vcombine.high %v982, %v982
      %v985 = vunpack.c.l.s4 1966171168
      %v986 = vunpack.c.0.s8 %v985
      %v987 = vlaneseq
      %v988 = vshrl.u32 %v987, 7
      %v989 = vsub.s32 %v986, %v988
      %v990 = vrot.slane %v982, %v989
      %v992 = vunpack.c.l.s4 1966171168
      %v993 = vunpack.c.0.s8 %v992
      %v994 = vlaneseq
      %v995 = vshrl.u32 %v994, 7
      %v996 = vsub.s32 %v993, %v995
      %v997 = vrot.slane %v983, %v996
      %v998 = vcombine.high %v990, %v990
      %v999 = vcombine.high %v997, %v997
      %v1000 = vld [vmem:[%s3] sm:$0xf]
      %v1003 = vunpack.c.l.s4 1966171168
      %v1004 = vunpack.c.0.s8 %v1003
      %v1005 = vlaneseq
      %v1006 = vshrl.u32 %v1005, 7
      %v1007 = vsub.s32 %v1004, %v1006
      %v1008 = vrot.slane %v1000, %v1007
      %v1009 = vcombine.high %v1008, %v1008
      %v1011 = vunpack.c.l.s4 1966171168
      %v1012 = vunpack.c.0.s8 %v1011
      %v1013 = vlaneseq
      %v1014 = vshrl.u32 %v1013, 7
      %v1015 = vsub.s32 %v1012, %v1014
      %v1016 = vrot.slane %v1008, %v1015
      %v1018 = vunpack.c.l.s4 1966171168
      %v1019 = vunpack.c.0.s8 %v1018
      %v1020 = vlaneseq
      %v1021 = vshrl.u32 %v1020, 7
      %v1022 = vsub.s32 %v1019, %v1021
      %v1023 = vrot.slane %v1009, %v1022
      %v1024 = vcombine.high %v1016, %v1016
      %v1025 = vcombine.high %v1023, %v1023
      %v1026 = vlaneseq
      %v1027 = vshrl.u32 %v1026, 7
      %v1028 = vsub.s32 0, %v1027
      %v1029 = vrot.slane %v990, %v1028
      %v1030 = vlaneseq
      %v1031 = vshrl.u32 %v1030, 7
      %v1032 = vsub.s32 0, %v1031
      %v1033 = vrot.slane %v997, %v1032
      %v1034 = vlaneseq
      %v1035 = vshrl.u32 %v1034, 7
      %v1036 = vsub.s32 0, %v1035
      %v1037 = vrot.slane %v998, %v1036
      %v1038 = vlaneseq
      %v1039 = vshrl.u32 %v1038, 7
      %v1040 = vsub.s32 0, %v1039
      %v1041 = vrot.slane %v999, %v1040
      %1042 = vrot.lane.b32.xlu0 %v1029, 64
      %v1043 = vpop.permute.xlu0 %1042
      %1044 = vrot.lane.b32.xlu0 %v1033, 64
      %v1045 = vpop.permute.xlu0 %1044
      %1046 = vrot.lane.b32.xlu0 %v1037, 64
      %v1047 = vpop.permute.xlu0 %1046
      %1048 = vrot.lane.b32.xlu0 %v1041, 64
      %v1049 = vpop.permute.xlu0 %1048
      %v1054 = vmul.f32 %v958, %v1043
      %v1055 = vmul.f32 %v959, %v1043
      %v1056 = vmul.f32 %v960, %v1043
      %v1057 = vmul.f32 %v961, %v1043
      %v1058 = vmul.f32 %v962, %v1045
      %v1059 = vmul.f32 %v963, %v1045
      %v1060 = vmul.f32 %v964, %v1045
      %v1061 = vmul.f32 %v965, %v1045
      %v1062 = vmul.f32 %v966, %v1047
      %v1063 = vmul.f32 %v967, %v1047
      %v1064 = vmul.f32 %v968, %v1047
      %v1065 = vmul.f32 %v969, %v1047
      %v1066 = vmul.f32 %v970, %v1049
      %v1067 = vmul.f32 %v971, %v1049
      %v1068 = vmul.f32 %v972, %v1049
      %v1069 = vmul.f32 %v973, %v1049
      %v1070 = vlaneseq
      %v1071 = vshrl.u32 %v1070, 7
      %v1072 = vsub.s32 0, %v1071
      %v1073 = vrot.slane %v1016, %v1072
      %v1074 = vlaneseq
      %v1075 = vshrl.u32 %v1074, 7
      %v1076 = vsub.s32 0, %v1075
      %v1077 = vrot.slane %v1023, %v1076
      %v1078 = vlaneseq
      %v1079 = vshrl.u32 %v1078, 7
      %v1080 = vsub.s32 0, %v1079
      %v1081 = vrot.slane %v1024, %v1080
      %v1082 = vlaneseq
      %v1083 = vshrl.u32 %v1082, 7
      %v1084 = vsub.s32 0, %v1083
      %v1085 = vrot.slane %v1025, %v1084
      %1086 = vrot.lane.b32.xlu0 %v1073, 64
      %v1087 = vpop.permute.xlu0 %1086
      %1088 = vrot.lane.b32.xlu0 %v1077, 64
      %v1089 = vpop.permute.xlu0 %1088
      %1090 = vrot.lane.b32.xlu0 %v1081, 64
      %v1091 = vpop.permute.xlu0 %1090
      %1092 = vrot.lane.b32.xlu0 %v1085, 64
      %v1093 = vpop.permute.xlu0 %1092
      %v1098 = vsub.f32 %v1054, %v1087
      %v1099 = vsub.f32 %v1055, %v1087
      %v1100 = vsub.f32 %v1056, %v1087
      %v1101 = vsub.f32 %v1057, %v1087
      %v1102 = vsub.f32 %v1058, %v1089
      %v1103 = vsub.f32 %v1059, %v1089
      %v1104 = vsub.f32 %v1060, %v1089
      %v1105 = vsub.f32 %v1061, %v1089
      %v1106 = vsub.f32 %v1062, %v1091
      %v1107 = vsub.f32 %v1063, %v1091
      %v1108 = vsub.f32 %v1064, %v1091
      %v1109 = vsub.f32 %v1065, %v1091
      %v1110 = vsub.f32 %v1066, %v1093
      %v1111 = vsub.f32 %v1067, %v1093
      %v1112 = vsub.f32 %v1068, %v1093
      %v1113 = vsub.f32 %v1069, %v1093
      %v1114 = vpack.c.bf16 %v1099, %v1098
      %v1115 = vpack.c.bf16 %v1101, %v1100
      %v1116 = vpack.c.bf16 %v1103, %v1102
      %v1117 = vpack.c.bf16 %v1105, %v1104
      %v1118 = vpack.c.bf16 %v1107, %v1106
      %v1119 = vpack.c.bf16 %v1109, %v1108
      %v1120 = vpack.c.bf16 %v1111, %v1110
      %v1121 = vpack.c.bf16 %v1113, %v1112
      %1130 = vrot.lane.b32.xlu0 %v1114, 64
      %v1131 = vpop.permute.xlu0 %1130
      %1132 = vrot.lane.b32.xlu0 %v1115, 64
      %v1133 = vpop.permute.xlu0 %1132
      %1134 = vrot.lane.b32.xlu0 %v1116, 64
      %v1135 = vpop.permute.xlu0 %1134
      %1136 = vrot.lane.b32.xlu0 %v1117, 64
      %v1137 = vpop.permute.xlu0 %1136
      %1138 = vrot.lane.b32.xlu0 %v1118, 64
      %v1139 = vpop.permute.xlu0 %1138
      %1140 = vrot.lane.b32.xlu0 %v1119, 64
      %v1141 = vpop.permute.xlu0 %1140
      %1142 = vrot.lane.b32.xlu0 %v1120, 64
      %v1143 = vpop.permute.xlu0 %1142
      %1144 = vrot.lane.b32.xlu0 %v1121, 64
      %v1145 = vpop.permute.xlu0 %1144
      %vm1154 = vcmask 654848
      %1155 = vst.msk [vmem:[#allocation2] sm:$0xff] %vm1154, %v1131
      %1156 = vst.msk [vmem:[#allocation2 + $0x8] sm:$0xff] %vm1154, %v1133
      %1157 = vst.msk [vmem:[#allocation2 + $0x10] sm:$0xff] %vm1154, %v1135
      %1158 = vst.msk [vmem:[#allocation2 + $0x18] sm:$0xff] %vm1154, %v1137
      %1159 = vst.msk [vmem:[#allocation2 + $0x20] sm:$0xff] %vm1154, %v1139
      %1160 = vst.msk [vmem:[#allocation2 + $0x28] sm:$0xff] %vm1154, %v1141
      %1161 = vst.msk [vmem:[#allocation2 + $0x30] sm:$0xff] %vm1154, %v1143
      %1162 = vst.msk [vmem:[#allocation2 + $0x38] sm:$0xff] %vm1154, %v1145
      %v1163 = vshra.s32 %v26, 20
      %v1164 = vshra.s32 %v27, 20
      %v1165 = vshra.s32 %v28, 20
      %v1166 = vshra.s32 %v29, 20
      %v1167 = vshra.s32 %v30, 20
      %v1168 = vshra.s32 %v31, 20
      %v1169 = vshra.s32 %v32, 20
      %v1170 = vshra.s32 %v33, 20
      %v1171 = vshra.s32 %v34, 20
      %v1172 = vshra.s32 %v35, 20
      %v1173 = vshra.s32 %v36, 20
      %v1174 = vshra.s32 %v37, 20
      %v1175 = vshra.s32 %v38, 20
      %v1176 = vshra.s32 %v39, 20
      %v1177 = vshra.s32 %v40, 20
      %v1178 = vshra.s32 %v41, 20
      %v1179 = vand.u32 %v1163, 15
      %v1180 = vand.u32 %v1164, 15
      %v1181 = vand.u32 %v1165, 15
      %v1182 = vand.u32 %v1166, 15
      %v1183 = vand.u32 %v1167, 15
      %v1184 = vand.u32 %v1168, 15
      %v1185 = vand.u32 %v1169, 15
      %v1186 = vand.u32 %v1170, 15
      %v1187 = vand.u32 %v1171, 15
      %v1188 = vand.u32 %v1172, 15
      %v1189 = vand.u32 %v1173, 15
      %v1190 = vand.u32 %v1174, 15
      %v1191 = vand.u32 %v1175, 15
      %v1192 = vand.u32 %v1176, 15
      %v1193 = vand.u32 %v1177, 15
      %v1194 = vand.u32 %v1178, 15
      %v1195 = vcvt.s32.f32 %v1179
      %v1196 = vcvt.s32.f32 %v1180
      %v1197 = vcvt.s32.f32 %v1181
      %v1198 = vcvt.s32.f32 %v1182
      %v1199 = vcvt.s32.f32 %v1183
      %v1200 = vcvt.s32.f32 %v1184
      %v1201 = vcvt.s32.f32 %v1185
      %v1202 = vcvt.s32.f32 %v1186
      %v1203 = vcvt.s32.f32 %v1187
      %v1204 = vcvt.s32.f32 %v1188
      %v1205 = vcvt.s32.f32 %v1189
      %v1206 = vcvt.s32.f32 %v1190
      %v1207 = vcvt.s32.f32 %v1191
      %v1208 = vcvt.s32.f32 %v1192
      %v1209 = vcvt.s32.f32 %v1193
      %v1210 = vcvt.s32.f32 %v1194
      %v1211 = vld [vmem:[%s2] sm:$0xf]
      %v1214 = vunpack.c.l.s4 1966171168
      %v1215 = vunpack.c.0.s8 %v1214
      %v1216 = vlaneseq
      %v1217 = vshrl.u32 %v1216, 7
      %v1218 = vsub.s32 %v1215, %v1217
      %v1219 = vrot.slane %v1211, %v1218
      %v1220 = vcombine.high %v1219, %v1219
      %v1222 = vunpack.c.l.s4 1966171168
      %v1223 = vunpack.c.0.s8 %v1222
      %v1224 = vlaneseq
      %v1225 = vshrl.u32 %v1224, 7
      %v1226 = vsub.s32 %v1223, %v1225
      %v1227 = vrot.slane %v1219, %v1226
      %v1229 = vunpack.c.l.s4 1966171168
      %v1230 = vunpack.c.0.s8 %v1229
      %v1231 = vlaneseq
      %v1232 = vshrl.u32 %v1231, 7
      %v1233 = vsub.s32 %v1230, %v1232
      %v1234 = vrot.slane %v1220, %v1233
      %v1235 = vcombine.high %v1227, %v1227
      %v1236 = vcombine.high %v1234, %v1234
      %v1237 = vld [vmem:[%s3] sm:$0xf]
      %v1240 = vunpack.c.l.s4 1966171168
      %v1241 = vunpack.c.0.s8 %v1240
      %v1242 = vlaneseq
      %v1243 = vshrl.u32 %v1242, 7
      %v1244 = vsub.s32 %v1241, %v1243
      %v1245 = vrot.slane %v1237, %v1244
      %v1246 = vcombine.high %v1245, %v1245
      %v1248 = vunpack.c.l.s4 1966171168
      %v1249 = vunpack.c.0.s8 %v1248
      %v1250 = vlaneseq
      %v1251 = vshrl.u32 %v1250, 7
      %v1252 = vsub.s32 %v1249, %v1251
      %v1253 = vrot.slane %v1245, %v1252
      %v1255 = vunpack.c.l.s4 1966171168
      %v1256 = vunpack.c.0.s8 %v1255
      %v1257 = vlaneseq
      %v1258 = vshrl.u32 %v1257, 7
      %v1259 = vsub.s32 %v1256, %v1258
      %v1260 = vrot.slane %v1246, %v1259
      %v1261 = vcombine.high %v1253, %v1253
      %v1262 = vcombine.high %v1260, %v1260
      %v1263 = vlaneseq
      %v1264 = vshrl.u32 %v1263, 7
      %v1265 = vsub.s32 0, %v1264
      %v1266 = vrot.slane %v1227, %v1265
      %v1267 = vlaneseq
      %v1268 = vshrl.u32 %v1267, 7
      %v1269 = vsub.s32 0, %v1268
      %v1270 = vrot.slane %v1234, %v1269
      %v1271 = vlaneseq
      %v1272 = vshrl.u32 %v1271, 7
      %v1273 = vsub.s32 0, %v1272
      %v1274 = vrot.slane %v1235, %v1273
      %v1275 = vlaneseq
      %v1276 = vshrl.u32 %v1275, 7
      %v1277 = vsub.s32 0, %v1276
      %v1278 = vrot.slane %v1236, %v1277
      %1279 = vrot.lane.b32.xlu0 %v1266, 48
      %v1280 = vpop.permute.xlu0 %1279
      %1281 = vrot.lane.b32.xlu0 %v1270, 48
      %v1282 = vpop.permute.xlu0 %1281
      %1283 = vrot.lane.b32.xlu0 %v1274, 48
      %v1284 = vpop.permute.xlu0 %1283
      %1285 = vrot.lane.b32.xlu0 %v1278, 48
      %v1286 = vpop.permute.xlu0 %1285
      %v1291 = vmul.f32 %v1195, %v1280
      %v1292 = vmul.f32 %v1196, %v1280
      %v1293 = vmul.f32 %v1197, %v1280
      %v1294 = vmul.f32 %v1198, %v1280
      %v1295 = vmul.f32 %v1199, %v1282
      %v1296 = vmul.f32 %v1200, %v1282
      %v1297 = vmul.f32 %v1201, %v1282
      %v1298 = vmul.f32 %v1202, %v1282
      %v1299 = vmul.f32 %v1203, %v1284
      %v1300 = vmul.f32 %v1204, %v1284
      %v1301 = vmul.f32 %v1205, %v1284
      %v1302 = vmul.f32 %v1206, %v1284
      %v1303 = vmul.f32 %v1207, %v1286
      %v1304 = vmul.f32 %v1208, %v1286
      %v1305 = vmul.f32 %v1209, %v1286
      %v1306 = vmul.f32 %v1210, %v1286
      %v1307 = vlaneseq
      %v1308 = vshrl.u32 %v1307, 7
      %v1309 = vsub.s32 0, %v1308
      %v1310 = vrot.slane %v1253, %v1309
      %v1311 = vlaneseq
      %v1312 = vshrl.u32 %v1311, 7
      %v1313 = vsub.s32 0, %v1312
      %v1314 = vrot.slane %v1260, %v1313
      %v1315 = vlaneseq
      %v1316 = vshrl.u32 %v1315, 7
      %v1317 = vsub.s32 0, %v1316
      %v1318 = vrot.slane %v1261, %v1317
      %v1319 = vlaneseq
      %v1320 = vshrl.u32 %v1319, 7
      %v1321 = vsub.s32 0, %v1320
      %v1322 = vrot.slane %v1262, %v1321
      %1323 = vrot.lane.b32.xlu0 %v1310, 48
      %v1324 = vpop.permute.xlu0 %1323
      %1325 = vrot.lane.b32.xlu0 %v1314, 48
      %v1326 = vpop.permute.xlu0 %1325
      %1327 = vrot.lane.b32.xlu0 %v1318, 48
      %v1328 = vpop.permute.xlu0 %1327
      %1329 = vrot.lane.b32.xlu0 %v1322, 48
      %v1330 = vpop.permute.xlu0 %1329
      %v1335 = vsub.f32 %v1291, %v1324
      %v1336 = vsub.f32 %v1292, %v1324
      %v1337 = vsub.f32 %v1293, %v1324
      %v1338 = vsub.f32 %v1294, %v1324
      %v1339 = vsub.f32 %v1295, %v1326
      %v1340 = vsub.f32 %v1296, %v1326
      %v1341 = vsub.f32 %v1297, %v1326
      %v1342 = vsub.f32 %v1298, %v1326
      %v1343 = vsub.f32 %v1299, %v1328
      %v1344 = vsub.f32 %v1300, %v1328
      %v1345 = vsub.f32 %v1301, %v1328
      %v1346 = vsub.f32 %v1302, %v1328
      %v1347 = vsub.f32 %v1303, %v1330
      %v1348 = vsub.f32 %v1304, %v1330
      %v1349 = vsub.f32 %v1305, %v1330
      %v1350 = vsub.f32 %v1306, %v1330
      %v1351 = vpack.c.bf16 %v1336, %v1335
      %v1352 = vpack.c.bf16 %v1338, %v1337
      %v1353 = vpack.c.bf16 %v1340, %v1339
      %v1354 = vpack.c.bf16 %v1342, %v1341
      %v1355 = vpack.c.bf16 %v1344, %v1343
      %v1356 = vpack.c.bf16 %v1346, %v1345
      %v1357 = vpack.c.bf16 %v1348, %v1347
      %v1358 = vpack.c.bf16 %v1350, %v1349
      %1367 = vrot.lane.b32.xlu0 %v1351, 80
      %v1368 = vpop.permute.xlu0 %1367
      %1369 = vrot.lane.b32.xlu0 %v1352, 80
      %v1370 = vpop.permute.xlu0 %1369
      %1371 = vrot.lane.b32.xlu0 %v1353, 80
      %v1372 = vpop.permute.xlu0 %1371
      %1373 = vrot.lane.b32.xlu0 %v1354, 80
      %v1374 = vpop.permute.xlu0 %1373
      %1375 = vrot.lane.b32.xlu0 %v1355, 80
      %v1376 = vpop.permute.xlu0 %1375
      %1377 = vrot.lane.b32.xlu0 %v1356, 80
      %v1378 = vpop.permute.xlu0 %1377
      %1379 = vrot.lane.b32.xlu0 %v1357, 80
      %v1380 = vpop.permute.xlu0 %1379
      %1381 = vrot.lane.b32.xlu0 %v1358, 80
      %v1382 = vpop.permute.xlu0 %1381
      %vm1391 = vcmask 786048
      %1392 = vst.msk [vmem:[#allocation2] sm:$0xff] %vm1391, %v1368
      %1393 = vst.msk [vmem:[#allocation2 + $0x8] sm:$0xff] %vm1391, %v1370
      %1394 = vst.msk [vmem:[#allocation2 + $0x10] sm:$0xff] %vm1391, %v1372
      %1395 = vst.msk [vmem:[#allocation2 + $0x18] sm:$0xff] %vm1391, %v1374
      %1396 = vst.msk [vmem:[#allocation2 + $0x20] sm:$0xff] %vm1391, %v1376
      %1397 = vst.msk [vmem:[#allocation2 + $0x28] sm:$0xff] %vm1391, %v1378
      %1398 = vst.msk [vmem:[#allocation2 + $0x30] sm:$0xff] %vm1391, %v1380
      %1399 = vst.msk [vmem:[#allocation2 + $0x38] sm:$0xff] %vm1391, %v1382
      %v1400 = vshra.s32 %v26, 24
      %v1401 = vshra.s32 %v27, 24
      %v1402 = vshra.s32 %v28, 24
      %v1403 = vshra.s32 %v29, 24
      %v1404 = vshra.s32 %v30, 24
      %v1405 = vshra.s32 %v31, 24
      %v1406 = vshra.s32 %v32, 24
      %v1407 = vshra.s32 %v33, 24
      %v1408 = vshra.s32 %v34, 24
      %v1409 = vshra.s32 %v35, 24
      %v1410 = vshra.s32 %v36, 24
      %v1411 = vshra.s32 %v37, 24
      %v1412 = vshra.s32 %v38, 24
      %v1413 = vshra.s32 %v39, 24
      %v1414 = vshra.s32 %v40, 24
      %v1415 = vshra.s32 %v41, 24
      %v1416 = vand.u32 %v1400, 15
      %v1417 = vand.u32 %v1401, 15
      %v1418 = vand.u32 %v1402, 15
      %v1419 = vand.u32 %v1403, 15
      %v1420 = vand.u32 %v1404, 15
      %v1421 = vand.u32 %v1405, 15
      %v1422 = vand.u32 %v1406, 15
      %v1423 = vand.u32 %v1407, 15
      %v1424 = vand.u32 %v1408, 15
      %v1425 = vand.u32 %v1409, 15
      %v1426 = vand.u32 %v1410, 15
      %v1427 = vand.u32 %v1411, 15
      %v1428 = vand.u32 %v1412, 15
      %v1429 = vand.u32 %v1413, 15
      %v1430 = vand.u32 %v1414, 15
      %v1431 = vand.u32 %v1415, 15
      %v1432 = vcvt.s32.f32 %v1416
      %v1433 = vcvt.s32.f32 %v1417
      %v1434 = vcvt.s32.f32 %v1418
      %v1435 = vcvt.s32.f32 %v1419
      %v1436 = vcvt.s32.f32 %v1420
      %v1437 = vcvt.s32.f32 %v1421
      %v1438 = vcvt.s32.f32 %v1422
      %v1439 = vcvt.s32.f32 %v1423
      %v1440 = vcvt.s32.f32 %v1424
      %v1441 = vcvt.s32.f32 %v1425
      %v1442 = vcvt.s32.f32 %v1426
      %v1443 = vcvt.s32.f32 %v1427
      %v1444 = vcvt.s32.f32 %v1428
      %v1445 = vcvt.s32.f32 %v1429
      %v1446 = vcvt.s32.f32 %v1430
      %v1447 = vcvt.s32.f32 %v1431
      %v1448 = vld [vmem:[%s2] sm:$0xf]
      %v1451 = vunpack.c.l.s4 1966171168
      %v1452 = vunpack.c.0.s8 %v1451
      %v1453 = vlaneseq
      %v1454 = vshrl.u32 %v1453, 7
      %v1455 = vsub.s32 %v1452, %v1454
      %v1456 = vrot.slane %v1448, %v1455
      %v1457 = vcombine.high %v1456, %v1456
      %v1459 = vunpack.c.l.s4 1966171168
      %v1460 = vunpack.c.0.s8 %v1459
      %v1461 = vlaneseq
      %v1462 = vshrl.u32 %v1461, 7
      %v1463 = vsub.s32 %v1460, %v1462
      %v1464 = vrot.slane %v1456, %v1463
      %v1466 = vunpack.c.l.s4 1966171168
      %v1467 = vunpack.c.0.s8 %v1466
      %v1468 = vlaneseq
      %v1469 = vshrl.u32 %v1468, 7
      %v1470 = vsub.s32 %v1467, %v1469
      %v1471 = vrot.slane %v1457, %v1470
      %v1472 = vcombine.high %v1464, %v1464
      %v1473 = vcombine.high %v1471, %v1471
      %v1474 = vld [vmem:[%s3] sm:$0xf]
      %v1477 = vunpack.c.l.s4 1966171168
      %v1478 = vunpack.c.0.s8 %v1477
      %v1479 = vlaneseq
      %v1480 = vshrl.u32 %v1479, 7
      %v1481 = vsub.s32 %v1478, %v1480
      %v1482 = vrot.slane %v1474, %v1481
      %v1483 = vcombine.high %v1482, %v1482
      %v1485 = vunpack.c.l.s4 1966171168
      %v1486 = vunpack.c.0.s8 %v1485
      %v1487 = vlaneseq
      %v1488 = vshrl.u32 %v1487, 7
      %v1489 = vsub.s32 %v1486, %v1488
      %v1490 = vrot.slane %v1482, %v1489
      %v1492 = vunpack.c.l.s4 1966171168
      %v1493 = vunpack.c.0.s8 %v1492
      %v1494 = vlaneseq
      %v1495 = vshrl.u32 %v1494, 7
      %v1496 = vsub.s32 %v1493, %v1495
      %v1497 = vrot.slane %v1483, %v1496
      %v1498 = vcombine.high %v1490, %v1490
      %v1499 = vcombine.high %v1497, %v1497
      %v1500 = vlaneseq
      %v1501 = vshrl.u32 %v1500, 7
      %v1502 = vsub.s32 0, %v1501
      %v1503 = vrot.slane %v1464, %v1502
      %v1504 = vlaneseq
      %v1505 = vshrl.u32 %v1504, 7
      %v1506 = vsub.s32 0, %v1505
      %v1507 = vrot.slane %v1471, %v1506
      %v1508 = vlaneseq
      %v1509 = vshrl.u32 %v1508, 7
      %v1510 = vsub.s32 0, %v1509
      %v1511 = vrot.slane %v1472, %v1510
      %v1512 = vlaneseq
      %v1513 = vshrl.u32 %v1512, 7
      %v1514 = vsub.s32 0, %v1513
      %v1515 = vrot.slane %v1473, %v1514
      %1516 = vrot.lane.b32.xlu0 %v1503, 32
      %v1517 = vpop.permute.xlu0 %1516
      %1518 = vrot.lane.b32.xlu0 %v1507, 32
      %v1519 = vpop.permute.xlu0 %1518
      %1520 = vrot.lane.b32.xlu0 %v1511, 32
      %v1521 = vpop.permute.xlu0 %1520
      %1522 = vrot.lane.b32.xlu0 %v1515, 32
      %v1523 = vpop.permute.xlu0 %1522
      %v1528 = vmul.f32 %v1432, %v1517
      %v1529 = vmul.f32 %v1433, %v1517
      %v1530 = vmul.f32 %v1434, %v1517
      %v1531 = vmul.f32 %v1435, %v1517
      %v1532 = vmul.f32 %v1436, %v1519
      %v1533 = vmul.f32 %v1437, %v1519
      %v1534 = vmul.f32 %v1438, %v1519
      %v1535 = vmul.f32 %v1439, %v1519
      %v1536 = vmul.f32 %v1440, %v1521
      %v1537 = vmul.f32 %v1441, %v1521
      %v1538 = vmul.f32 %v1442, %v1521
      %v1539 = vmul.f32 %v1443, %v1521
      %v1540 = vmul.f32 %v1444, %v1523
      %v1541 = vmul.f32 %v1445, %v1523
      %v1542 = vmul.f32 %v1446, %v1523
      %v1543 = vmul.f32 %v1447, %v1523
      %v1544 = vlaneseq
      %v1545 = vshrl.u32 %v1544, 7
      %v1546 = vsub.s32 0, %v1545
      %v1547 = vrot.slane %v1490, %v1546
      %v1548 = vlaneseq
      %v1549 = vshrl.u32 %v1548, 7
      %v1550 = vsub.s32 0, %v1549
      %v1551 = vrot.slane %v1497, %v1550
      %v1552 = vlaneseq
      %v1553 = vshrl.u32 %v1552, 7
      %v1554 = vsub.s32 0, %v1553
      %v1555 = vrot.slane %v1498, %v1554
      %v1556 = vlaneseq
      %v1557 = vshrl.u32 %v1556, 7
      %v1558 = vsub.s32 0, %v1557
      %v1559 = vrot.slane %v1499, %v1558
      %1560 = vrot.lane.b32.xlu0 %v1547, 32
      %v1561 = vpop.permute.xlu0 %1560
      %1562 = vrot.lane.b32.xlu0 %v1551, 32
      %v1563 = vpop.permute.xlu0 %1562
      %1564 = vrot.lane.b32.xlu0 %v1555, 32
      %v1565 = vpop.permute.xlu0 %1564
      %1566 = vrot.lane.b32.xlu0 %v1559, 32
      %v1567 = vpop.permute.xlu0 %1566
      %v1572 = vsub.f32 %v1528, %v1561
      %v1573 = vsub.f32 %v1529, %v1561
      %v1574 = vsub.f32 %v1530, %v1561
      %v1575 = vsub.f32 %v1531, %v1561
      %v1576 = vsub.f32 %v1532, %v1563
      %v1577 = vsub.f32 %v1533, %v1563
      %v1578 = vsub.f32 %v1534, %v1563
      %v1579 = vsub.f32 %v1535, %v1563
      %v1580 = vsub.f32 %v1536, %v1565
      %v1581 = vsub.f32 %v1537, %v1565
      %v1582 = vsub.f32 %v1538, %v1565
      %v1583 = vsub.f32 %v1539, %v1565
      %v1584 = vsub.f32 %v1540, %v1567
      %v1585 = vsub.f32 %v1541, %v1567
      %v1586 = vsub.f32 %v1542, %v1567
      %v1587 = vsub.f32 %v1543, %v1567
      %v1588 = vpack.c.bf16 %v1573, %v1572
      %v1589 = vpack.c.bf16 %v1575, %v1574
      %v1590 = vpack.c.bf16 %v1577, %v1576
      %v1591 = vpack.c.bf16 %v1579, %v1578
      %v1592 = vpack.c.bf16 %v1581, %v1580
      %v1593 = vpack.c.bf16 %v1583, %v1582
      %v1594 = vpack.c.bf16 %v1585, %v1584
      %v1595 = vpack.c.bf16 %v1587, %v1586
      %1604 = vrot.lane.b32.xlu0 %v1588, 96
      %v1605 = vpop.permute.xlu0 %1604
      %1606 = vrot.lane.b32.xlu0 %v1589, 96
      %v1607 = vpop.permute.xlu0 %1606
      %1608 = vrot.lane.b32.xlu0 %v1590, 96
      %v1609 = vpop.permute.xlu0 %1608
      %1610 = vrot.lane.b32.xlu0 %v1591, 96
      %v1611 = vpop.permute.xlu0 %1610
      %1612 = vrot.lane.b32.xlu0 %v1592, 96
      %v1613 = vpop.permute.xlu0 %1612
      %1614 = vrot.lane.b32.xlu0 %v1593, 96
      %v1615 = vpop.permute.xlu0 %1614
      %1616 = vrot.lane.b32.xlu0 %v1594, 96
      %v1617 = vpop.permute.xlu0 %1616
      %1618 = vrot.lane.b32.xlu0 %v1595, 96
      %v1619 = vpop.permute.xlu0 %1618
      %vm1628 = vcmask 917248
      %1629 = vst.msk [vmem:[#allocation2] sm:$0xff] %vm1628, %v1605
      %1630 = vst.msk [vmem:[#allocation2 + $0x8] sm:$0xff] %vm1628, %v1607
      %1631 = vst.msk [vmem:[#allocation2 + $0x10] sm:$0xff] %vm1628, %v1609
      %1632 = vst.msk [vmem:[#allocation2 + $0x18] sm:$0xff] %vm1628, %v1611
      %1633 = vst.msk [vmem:[#allocation2 + $0x20] sm:$0xff] %vm1628, %v1613
      %1634 = vst.msk [vmem:[#allocation2 + $0x28] sm:$0xff] %vm1628, %v1615
      %1635 = vst.msk [vmem:[#allocation2 + $0x30] sm:$0xff] %vm1628, %v1617
      %1636 = vst.msk [vmem:[#allocation2 + $0x38] sm:$0xff] %vm1628, %v1619
      %v1637 = vshra.s32 %v26, 28
      %v1638 = vshra.s32 %v27, 28
      %v1639 = vshra.s32 %v28, 28
      %v1640 = vshra.s32 %v29, 28
      %v1641 = vshra.s32 %v30, 28
      %v1642 = vshra.s32 %v31, 28
      %v1643 = vshra.s32 %v32, 28
      %v1644 = vshra.s32 %v33, 28
      %v1645 = vshra.s32 %v34, 28
      %v1646 = vshra.s32 %v35, 28
      %v1647 = vshra.s32 %v36, 28
      %v1648 = vshra.s32 %v37, 28
      %v1649 = vshra.s32 %v38, 28
      %v1650 = vshra.s32 %v39, 28
      %v1651 = vshra.s32 %v40, 28
      %v1652 = vshra.s32 %v41, 28
      %v1653 = vand.u32 %v1637, 15
      %v1654 = vand.u32 %v1638, 15
      %v1655 = vand.u32 %v1639, 15
      %v1656 = vand.u32 %v1640, 15
      %v1657 = vand.u32 %v1641, 15
      %v1658 = vand.u32 %v1642, 15
      %v1659 = vand.u32 %v1643, 15
      %v1660 = vand.u32 %v1644, 15
      %v1661 = vand.u32 %v1645, 15
      %v1662 = vand.u32 %v1646, 15
      %v1663 = vand.u32 %v1647, 15
      %v1664 = vand.u32 %v1648, 15
      %v1665 = vand.u32 %v1649, 15
      %v1666 = vand.u32 %v1650, 15
      %v1667 = vand.u32 %v1651, 15
      %v1668 = vand.u32 %v1652, 15
      %v1669 = vcvt.s32.f32 %v1653
      %v1670 = vcvt.s32.f32 %v1654
      %v1671 = vcvt.s32.f32 %v1655
      %v1672 = vcvt.s32.f32 %v1656
      %v1673 = vcvt.s32.f32 %v1657
      %v1674 = vcvt.s32.f32 %v1658
      %v1675 = vcvt.s32.f32 %v1659
      %v1676 = vcvt.s32.f32 %v1660
      %v1677 = vcvt.s32.f32 %v1661
      %v1678 = vcvt.s32.f32 %v1662
      %v1679 = vcvt.s32.f32 %v1663
      %v1680 = vcvt.s32.f32 %v1664
      %v1681 = vcvt.s32.f32 %v1665
      %v1682 = vcvt.s32.f32 %v1666
      %v1683 = vcvt.s32.f32 %v1667
      %v1684 = vcvt.s32.f32 %v1668
      %v1685 = vld [vmem:[%s2] sm:$0xf]
      %v1688 = vunpack.c.l.s4 1966171168
      %v1689 = vunpack.c.0.s8 %v1688
      %v1690 = vlaneseq
      %v1691 = vshrl.u32 %v1690, 7
      %v1692 = vsub.s32 %v1689, %v1691
      %v1693 = vrot.slane %v1685, %v1692
      %v1694 = vcombine.high %v1693, %v1693
      %v1696 = vunpack.c.l.s4 1966171168
      %v1697 = vunpack.c.0.s8 %v1696
      %v1698 = vlaneseq
      %v1699 = vshrl.u32 %v1698, 7
      %v1700 = vsub.s32 %v1697, %v1699
      %v1701 = vrot.slane %v1693, %v1700
      %v1703 = vunpack.c.l.s4 1966171168
      %v1704 = vunpack.c.0.s8 %v1703
      %v1705 = vlaneseq
      %v1706 = vshrl.u32 %v1705, 7
      %v1707 = vsub.s32 %v1704, %v1706
      %v1708 = vrot.slane %v1694, %v1707
      %v1709 = vcombine.high %v1701, %v1701
      %v1710 = vcombine.high %v1708, %v1708
      %v1711 = vld [vmem:[%s3] sm:$0xf]
      %v1714 = vunpack.c.l.s4 1966171168
      %v1715 = vunpack.c.0.s8 %v1714
      %v1716 = vlaneseq
      %v1717 = vshrl.u32 %v1716, 7
      %v1718 = vsub.s32 %v1715, %v1717
      %v1719 = vrot.slane %v1711, %v1718
      %v1720 = vcombine.high %v1719, %v1719
      %v1722 = vunpack.c.l.s4 1966171168
      %v1723 = vunpack.c.0.s8 %v1722
      %v1724 = vlaneseq
      %v1725 = vshrl.u32 %v1724, 7
      %v1726 = vsub.s32 %v1723, %v1725
      %v1727 = vrot.slane %v1719, %v1726
      %v1729 = vunpack.c.l.s4 1966171168
      %v1730 = vunpack.c.0.s8 %v1729
      %v1731 = vlaneseq
      %v1732 = vshrl.u32 %v1731, 7
      %v1733 = vsub.s32 %v1730, %v1732
      %v1734 = vrot.slane %v1720, %v1733
      %v1735 = vcombine.high %v1727, %v1727
      %v1736 = vcombine.high %v1734, %v1734
      %v1737 = vlaneseq
      %v1738 = vshrl.u32 %v1737, 7
      %v1739 = vsub.s32 0, %v1738
      %v1740 = vrot.slane %v1701, %v1739
      %v1741 = vlaneseq
      %v1742 = vshrl.u32 %v1741, 7
      %v1743 = vsub.s32 0, %v1742
      %v1744 = vrot.slane %v1708, %v1743
      %v1745 = vlaneseq
      %v1746 = vshrl.u32 %v1745, 7
      %v1747 = vsub.s32 0, %v1746
      %v1748 = vrot.slane %v1709, %v1747
      %v1749 = vlaneseq
      %v1750 = vshrl.u32 %v1749, 7
      %v1751 = vsub.s32 0, %v1750
      %v1752 = vrot.slane %v1710, %v1751
      %1753 = vrot.lane.b32.xlu0 %v1740, 16
      %v1754 = vpop.permute.xlu0 %1753
      %1755 = vrot.lane.b32.xlu0 %v1744, 16
      %v1756 = vpop.permute.xlu0 %1755
      %1757 = vrot.lane.b32.xlu0 %v1748, 16
      %v1758 = vpop.permute.xlu0 %1757
      %1759 = vrot.lane.b32.xlu0 %v1752, 16
      %v1760 = vpop.permute.xlu0 %1759
      %v1765 = vmul.f32 %v1669, %v1754
      %v1766 = vmul.f32 %v1670, %v1754
      %v1767 = vmul.f32 %v1671, %v1754
      %v1768 = vmul.f32 %v1672, %v1754
      %v1769 = vmul.f32 %v1673, %v1756
      %v1770 = vmul.f32 %v1674, %v1756
      %v1771 = vmul.f32 %v1675, %v1756
      %v1772 = vmul.f32 %v1676, %v1756
      %v1773 = vmul.f32 %v1677, %v1758
      %v1774 = vmul.f32 %v1678, %v1758
      %v1775 = vmul.f32 %v1679, %v1758
      %v1776 = vmul.f32 %v1680, %v1758
      %v1777 = vmul.f32 %v1681, %v1760
      %v1778 = vmul.f32 %v1682, %v1760
      %v1779 = vmul.f32 %v1683, %v1760
      %v1780 = vmul.f32 %v1684, %v1760
      %v1781 = vlaneseq
      %v1782 = vshrl.u32 %v1781, 7
      %v1783 = vsub.s32 0, %v1782
      %v1784 = vrot.slane %v1727, %v1783
      %v1785 = vlaneseq
      %v1786 = vshrl.u32 %v1785, 7
      %v1787 = vsub.s32 0, %v1786
      %v1788 = vrot.slane %v1734, %v1787
      %v1789 = vlaneseq
      %v1790 = vshrl.u32 %v1789, 7
      %v1791 = vsub.s32 0, %v1790
      %v1792 = vrot.slane %v1735, %v1791
      %v1793 = vlaneseq
      %v1794 = vshrl.u32 %v1793, 7
      %v1795 = vsub.s32 0, %v1794
      %v1796 = vrot.slane %v1736, %v1795
      %1797 = vrot.lane.b32.xlu0 %v1784, 16
      %v1798 = vpop.permute.xlu0 %1797
      %1799 = vrot.lane.b32.xlu0 %v1788, 16
      %v1800 = vpop.permute.xlu0 %1799
      %1801 = vrot.lane.b32.xlu0 %v1792, 16
      %v1802 = vpop.permute.xlu0 %1801
      %1803 = vrot.lane.b32.xlu0 %v1796, 16
      %v1804 = vpop.permute.xlu0 %1803
      %v1809 = vsub.f32 %v1765, %v1798
      %v1810 = vsub.f32 %v1766, %v1798
      %v1811 = vsub.f32 %v1767, %v1798
      %v1812 = vsub.f32 %v1768, %v1798
      %v1813 = vsub.f32 %v1769, %v1800
      %v1814 = vsub.f32 %v1770, %v1800
      %v1815 = vsub.f32 %v1771, %v1800
      %v1816 = vsub.f32 %v1772, %v1800
      %v1817 = vsub.f32 %v1773, %v1802
      %v1818 = vsub.f32 %v1774, %v1802
      %v1819 = vsub.f32 %v1775, %v1802
      %v1820 = vsub.f32 %v1776, %v1802
      %v1821 = vsub.f32 %v1777, %v1804
      %v1822 = vsub.f32 %v1778, %v1804
      %v1823 = vsub.f32 %v1779, %v1804
      %v1824 = vsub.f32 %v1780, %v1804
      %v1825 = vpack.c.bf16 %v1810, %v1809
      %v1826 = vpack.c.bf16 %v1812, %v1811
      %v1827 = vpack.c.bf16 %v1814, %v1813
      %v1828 = vpack.c.bf16 %v1816, %v1815
      %v1829 = vpack.c.bf16 %v1818, %v1817
      %v1830 = vpack.c.bf16 %v1820, %v1819
      %v1831 = vpack.c.bf16 %v1822, %v1821
      %v1832 = vpack.c.bf16 %v1824, %v1823
      %1841 = vrot.lane.b32.xlu0 %v1825, 112
      %v1842 = vpop.permute.xlu0 %1841
      %1843 = vrot.lane.b32.xlu0 %v1826, 112
      %v1844 = vpop.permute.xlu0 %1843
      %1845 = vrot.lane.b32.xlu0 %v1827, 112
      %v1846 = vpop.permute.xlu0 %1845
      %1847 = vrot.lane.b32.xlu0 %v1828, 112
      %v1848 = vpop.permute.xlu0 %1847
      %1849 = vrot.lane.b32.xlu0 %v1829, 112
      %v1850 = vpop.permute.xlu0 %1849
      %1851 = vrot.lane.b32.xlu0 %v1830, 112
      %v1852 = vpop.permute.xlu0 %1851
      %1853 = vrot.lane.b32.xlu0 %v1831, 112
      %v1854 = vpop.permute.xlu0 %1853
      %1855 = vrot.lane.b32.xlu0 %v1832, 112
      %v1856 = vpop.permute.xlu0 %1855
      %vm1865 = vcmask 1048448
      %1866 = vst.msk [vmem:[#allocation2] sm:$0xff] %vm1865, %v1842
      %1867 = vst.msk [vmem:[#allocation2 + $0x8] sm:$0xff] %vm1865, %v1844
      %1868 = vst.msk [vmem:[#allocation2 + $0x10] sm:$0xff] %vm1865, %v1846
      %1869 = vst.msk [vmem:[#allocation2 + $0x18] sm:$0xff] %vm1865, %v1848
      %1870 = vst.msk [vmem:[#allocation2 + $0x20] sm:$0xff] %vm1865, %v1850
      %1871 = vst.msk [vmem:[#allocation2 + $0x28] sm:$0xff] %vm1865, %v1852
      %1872 = vst.msk [vmem:[#allocation2 + $0x30] sm:$0xff] %vm1865, %v1854
      %1873 = vst.msk [vmem:[#allocation2 + $0x38] sm:$0xff] %vm1865, %v1856
    $region25: #{tpu_custom_call.1} parent=1 // pred_fallthru
      _
    %v1874 = vld [vmem:[%s0] sm:$0xf]
    %v1875 = vld [vmem:[%s0 + $0x4] sm:$0xf]
    %v1876 = vld [vmem:[#allocation2] sm:$0xff]
    %v1877 = vld [vmem:[#allocation2 + $0x8] sm:$0xff]
    %v1878 = vld [vmem:[#allocation2 + $0x10] sm:$0xff]
    %v1879 = vld [vmem:[#allocation2 + $0x18] sm:$0xff]
    %v1880 = vld [vmem:[#allocation2 + $0x20] sm:$0xff]
    %v1881 = vld [vmem:[#allocation2 + $0x28] sm:$0xff]
    %v1882 = vld [vmem:[#allocation2 + $0x30] sm:$0xff]
    %v1883 = vld [vmem:[#allocation2 + $0x38] sm:$0xff]
    %v1884 = vld [vmem:[%s4] sm:$0x1]
    %v1886 = vlaneseq
    %v1887 = vshrl.u32 %v1886, 7
    %v1888 = vsub.s32 0, %v1887
    %v1889 = vrot.slane %v1884, %v1888
    %v1893 = vunpack.c.l.b16 %v1874
    %v1894 = vunpack.c.l.b16 %v1875
    %v1895 = vpack.c.b16 %v1894, %v1893
    %1897 = vmatprep.subr.bf16.mxu0 0
    %1898 = vmatpush1.bf16.msra.mxu0 %v1876
    %1899 = vmatprep.subr.bf16.mxu0 0
    %1900 = vmatpush1.bf16.msra.mxu0 %v1877
    %1901 = vmatprep.subr.bf16.mxu0 0
    %1902 = vmatpush1.bf16.msra.mxu0 %v1878
    %1903 = vmatprep.subr.bf16.mxu0 0
    %1904 = vmatpush1.bf16.msra.mxu0 %v1879
    %1905 = vmatprep.subr.bf16.mxu0 0
    %1906 = vmatpush1.bf16.msra.mxu0 %v1880
    %1907 = vmatprep.subr.bf16.mxu0 0
    %1908 = vmatpush1.bf16.msra.mxu0 %v1881
    %1909 = vmatprep.subr.bf16.mxu0 0
    %1910 = vmatpush1.bf16.msra.mxu0 %v1882
    %1911 = vmatprep.subr.bf16.mxu0 0
    %1912 = vmatpush1.bf16.msra.mxu0 %v1883
    %1913 = vmatprep.subr.bf16.mxu0 0
    %1914 = vmatpush1.bf16.msra.mxu0 0
    %1915 = vmatprep.subr.bf16.mxu0 0
    %1916 = vmatpush1.bf16.msra.mxu0 0
    %1917 = vmatprep.subr.bf16.mxu0 0
    %1918 = vmatpush1.bf16.msra.mxu0 0
    %1919 = vmatprep.subr.bf16.mxu0 0
    %1920 = vmatpush1.bf16.msra.mxu0 0
    %1921 = vmatprep.subr.bf16.mxu0 0
    %1922 = vmatpush1.bf16.msra.mxu0 0
    %1923 = vmatprep.subr.bf16.mxu0 0
    %1924 = vmatpush1.bf16.msra.mxu0 0
    %1925 = vmatprep.subr.bf16.mxu0 0
    %1926 = vmatpush1.bf16.msra.mxu0 0
    %1927 = vmatprep.subr.bf16.mxu0 0
    %1928 = vmatpush1.bf16.msra.mxu0 0
    %1929 = vmatprep.mubr.bf16.mxu0 0
    %1930 = vmatmul.mubr.bf16.gmra.mrb[0].mxu0 %v1895
    %v1931 = vpop.f32.mrb[0].mxu0
    %v1932 = vadd.f32 %v1889, %v1931
    %v1933 = vpop.f32.mrb[0].mxu0
    %v1934 = vpop.f32.mrb[0].mxu0
    %v1935 = vadd.f32 %v1889, %v1934
    %v1936 = vpop.f32.mrb[0].mxu0
    %1937 = vdwg.mxu0
    %1938 = vst [vmem:[#allocation3] sm:$0xff] %v1932
    %1939 = vst [vmem:[#allocation3 + $0x8] sm:$0xff] %v1935
    // Predicated region
    $region26: #{tpu_custom_call.1} parent=1 // pred_check
      _
    $region27: #{tpu_custom_call.1} parent=1 // pred_check_branch
      %1941 = sbr.rel (0) target = $region29
    $region28: #{tpu_custom_call.1} parent=1 // pred_region
      %s1943 = ssub.s32 256, 256
      %1944 = vsyncadd [#allocation4], %s1943
      %s1945 = sshll.u32 [#allocation3], 4
      %s1946 = int_to_ptr.vmem [resolvable:$true] %s1945
      %1951 = dma.vmem_to_hbm [thread:$0]  %s1946, 256, %s5, [#allocation4], 128, 128, 8
    $region29: #{tpu_custom_call.1} parent=1 // pred_fallthru
      _
    // Predicated region
    $region30: #{tpu_custom_call.1} parent=1 // pred_check
      _
    $region31: #{tpu_custom_call.1} parent=1 // pred_check_branch
      %1953 = sbr.rel (0) target = $region33
    $region32: #{tpu_custom_call.1} parent=1 // pred_region
      %1954 = dma.done [#allocation4], 256
    $region33: #{tpu_custom_call.1} parent=1 // pred_fallthru
      _
    %1955 = vsyncpa [#allocation4], 1

</llo_original>
